<compile_context>
chip_gen: v6e
topology: v6e:2x2x1
jax: 0.10.0
libtpu: 0.0.40
codegen_flags: <defaults>
</compile_context>

<pallas_src>
import jax
import jax.numpy as jnp
from jax.experimental import pallas as pl
from jax.experimental.pallas import tpu as pltpu

LANE = 128
B_ALIGN = 16            # batch rows aligned to bf16 sublane packing (16, 128)


def _round_up(n, m):
    return ((n + m - 1) // m) * m


def _pad_axis(a, axis, new_size):
    pad = [(0, 0)] * a.ndim
    pad[axis] = (0, new_size - a.shape[axis])
    return jnp.pad(a, pad)


def _layer_norm(x, g, b, eps=1e-5):
    mu = jnp.mean(x, axis=-1, keepdims=True)
    var = jnp.mean((x - mu) ** 2, axis=-1, keepdims=True)
    return (x - mu) * jax.lax.rsqrt(var + eps) * g + b


# ----------------------------------------------------------------------------
# Kernel
# ----------------------------------------------------------------------------
def make_losnet_kernel(*, T, B_BLK, H, G, D_dyn, D_stat, offsets):
    """Kernel body for one batch block (all sizes / packed-vector offsets static)."""

    def kernel(
        x_ref,        # (T, B_BLK, D_dyn) bf16  time-major dynamic features
        len_ref,      # (B_BLK, 1)        i32   valid length per sequence
        static_ref,   # (B_BLK, D_stat)   f32
        w_ih_ref,     # (D_dyn, G)        bf16  gate cols [i|f|o|g], compact 4H lanes
        w_hh_ref,     # (H, G)            bf16  same column layout
        vec_ref,      # (1, P)            f32   packed biases / LN params (128-aligned)
        w1_ref,       # (H+D_stat, 50)    f32
        w2_ref,       # (50, 20)          f32
        w3_ref,       # (20, 10)          f32
        w4_ref,       # (10, 128)         f32   lane-padded output projection
        out_ref,      # (B_BLK, 128)      f32   lane-dense output slab
        gates_ref,    # (T, B_BLK, G)     bf16  VMEM scratch (hoisted x @ W_ih)
    ):
        def vparam(name):
            off, n = offsets[name]          # off is a multiple of 128 (lane aligned)
            return vec_ref[:, off:off + n]

        # ---- hoisted input projection: one matmul for all timesteps ---------
        x2 = x_ref[...].reshape(T * B_BLK, D_dyn)                    # layout no-op
        gx = jnp.dot(x2, w_ih_ref[...], preferred_element_type=jnp.float32)
        gx = gx + vparam("b_lstm")
        gates_ref[...] = gx.reshape(T, B_BLK, G).astype(gates_ref.dtype)

        # Hoisted mask operand: broadcast once, one compare per step inside loop.
        len_b = jnp.broadcast_to(len_ref[...], (B_BLK, H))

        # ---- LSTM recurrence (only h @ W_hh on the serial critical path) -----
        def step(t, carry):
            h, c = carry                                             # (B_BLK, H) f32
            pre = gates_ref[t] + jnp.dot(
                h.astype(jnp.bfloat16), w_hh_ref[...],
                preferred_element_type=jnp.float32)                  # (B_BLK, G)
            sig = jax.nn.sigmoid(pre[:, :3 * H])                     # i | f | o
            i_g = sig[:, 0:H]
            f_g = sig[:, H:2 * H]
            o_g = sig[:, 2 * H:3 * H]
            g_g = jnp.tanh(pre[:, 3 * H:4 * H])
            c_new = f_g * c + i_g * g_g
            h_new = o_g * jnp.tanh(c_new)
            valid = len_b > t                       # freeze state past sequence end
            return jnp.where(valid, h_new, h), jnp.where(valid, c_new, c)

        h0 = jnp.zeros((B_BLK, H), jnp.float32)
        c0 = jnp.zeros((B_BLK, H), jnp.float32)
        unroll = True if T <= 16 else 8             # full unroll only for small T
        h_T, _ = jax.lax.fori_loop(0, T, step, (h0, c0), unroll=unroll)

        # ---- head: ht = ht[-1]; LayerNorm; concat static; fc funnel ----------
        ht = _layer_norm(h_T, vparam("ln_ht_g"), vparam("ln_ht_b"))
        combined = jnp.concatenate([ht, static_ref[...]], axis=1)

        z = _layer_norm(combined, vparam("ln1_g"), vparam("ln1_b"))
        z = jnp.dot(z, w1_ref[...], preferred_element_type=jnp.float32) + vparam("b1")
        z = jax.nn.relu(_layer_norm(z, vparam("ln2_g"), vparam("ln2_b")))
        z = jnp.dot(z, w2_ref[...], preferred_element_type=jnp.float32) + vparam("b2")
        z = jax.nn.relu(_layer_norm(z, vparam("ln3_g"), vparam("ln3_b")))
        # nn.Dropout(0.2) -> identity in eval mode
        z = jnp.dot(z, w3_ref[...], preferred_element_type=jnp.float32) + vparam("b3")
        z = jax.nn.relu(_layer_norm(z, vparam("ln4_g"), vparam("ln4_b")))
        # nn.Dropout(0.2) -> identity in eval mode
        z = jnp.dot(z, w4_ref[...], preferred_element_type=jnp.float32) + vparam("b4")

        out_ref[...] = z.astype(out_ref.dtype)      # lane-dense (B_BLK, 128) store

    return kernel


# ----------------------------------------------------------------------------
# One-time parameter layout plumbing
# ----------------------------------------------------------------------------
def _reorder_gates(w, H, G):
    """Columns of `w` are in PyTorch gate order [i|f|g|o]; return [i|f|o|g],
    zero-padded to G total columns (compact: each gate keeps its H lanes)."""
    i, f, g, o = (w[:, k * H:(k + 1) * H] for k in range(4))
    return _pad_axis(jnp.concatenate([i, f, o, g], axis=1), 1, G)


def prepare_params(params, *, hidden_size, out_features):
    H = hidden_size
    G = _round_up(4 * H, LANE)                 # compact gate width (128 for H=32)
    out_pad = _round_up(out_features, LANE)

    w_ih = _reorder_gates(params["w_ih"], H, G).astype(jnp.bfloat16)   # (D, G)
    w_hh = _reorder_gates(params["w_hh"], H, G).astype(jnp.bfloat16)   # (H, G)
    # NOTE: for a real checkpoint this must be (b_ih + b_hh).
    b_lstm = _reorder_gates(params["b_lstm"], H, G)                    # (1, G)

    w4 = _pad_axis(params["w4"], 1, out_pad)                           # (10, 128)
    b4 = _pad_axis(params["b4"], 1, out_pad)                           # (1, 128)

    sections = [
        ("b_lstm", b_lstm),
        ("ln_ht_g", params["ln_ht_g"]), ("ln_ht_b", params["ln_ht_b"]),
        ("ln1_g", params["ln1_g"]), ("ln1_b", params["ln1_b"]), ("b1", params["b1"]),
        ("ln2_g", params["ln2_g"]), ("ln2_b", params["ln2_b"]), ("b2", params["b2"]),
        ("ln3_g", params["ln3_g"]), ("ln3_b", params["ln3_b"]), ("b3", params["b3"]),
        ("ln4_g", params["ln4_g"]), ("ln4_b", params["ln4_b"]), ("b4", b4),
    ]
    # Every section starts on a 128-lane boundary -> clean vreg views in-kernel.
    offsets, cols, off = {}, [], 0
    for name, arr in sections:
        n = arr.shape[1]
        slot = _round_up(n, LANE)
        offsets[name] = (off, n)
        cols.append(_pad_axis(arr.astype(jnp.float32), 1, slot))
        off += slot
    vec = jnp.concatenate(cols, axis=1)        # (1, 16*128) f32, ~8 KiB

    return {
        "H": H, "G": G, "out_pad": out_pad, "offsets": offsets,
        "w_ih": w_ih, "w_hh": w_hh, "vec": vec,
        "w1": params["w1"], "w2": params["w2"], "w3": params["w3"], "w4": w4,
    }


# ----------------------------------------------------------------------------
# Wrapper
# ----------------------------------------------------------------------------
def _pick_batch_block(B, T, G, D_dyn, D_stat, out_pad, budget_bytes):
    """Batch-block rows under a per-block VMEM budget (multiple of 16, 16..256)."""
    bytes_per_row = (
        2 * T * D_dyn * 2                       # x block (bf16), double-buffered
        + 2 * (D_stat * 4 + 4 + out_pad * 4)    # static / lengths / out, double-buffered
        + T * G * 2                             # gates scratch (bf16)
        + 16 * G                                # h/c carries + step temporaries
    )
    cap = max(B_ALIGN,
              min(256, (budget_bytes // bytes_per_row) // B_ALIGN * B_ALIGN))
    return min(cap, _round_up(max(B, B_ALIGN), B_ALIGN))


def losnet_forward(dynamic_x_tbd, lengths, static_x, packed, out_features):
    """dynamic_x_tbd: (T, B, D_dyn) f32; lengths: (B,) i32; static_x: (B, D_stat) f32."""
    T, B, D_dyn = dynamic_x_tbd.shape
    D_stat = static_x.shape[1]
    H, G, out_pad = packed["H"], packed["G"], packed["out_pad"]

    # Generation-aware block sizing: keep the per-block footprint well under the
    # smallest scoped-VMEM budget (v5e 16 MiB default, v7x 64 MiB physical).
    B_BLK = _pick_batch_block(B, T, G, D_dyn, D_stat, out_pad,
                              budget_bytes=12 * 1024 * 1024)
    B_pad = _round_up(B, B_BLK)
    n_blk = B_pad // B_BLK

    x = _pad_axis(dynamic_x_tbd.astype(jnp.float32), 1, B_pad).astype(jnp.bfloat16)
    lengths_p = _pad_axis(lengths.astype(jnp.int32).reshape(B, 1), 0, B_pad)
    static_p = _pad_axis(static_x.astype(jnp.float32), 0, B_pad)

    kernel = make_losnet_kernel(T=T, B_BLK=B_BLK, H=H, G=G, D_dyn=D_dyn,
                                D_stat=D_stat, offsets=packed["offsets"])

    # Weights / packed params stay fully resident in VMEM (tiny), batch-dependent
    # arrays are tiled over the grid and double-buffered by the pipeline.
    resident = pl.BlockSpec(memory_space=pltpu.MemorySpace.VMEM)
    out = pl.pallas_call(
        kernel,
        out_shape=jax.ShapeDtypeStruct((B_pad, out_pad), jnp.float32),
        grid=(n_blk,),
        in_specs=[
            pl.BlockSpec((T, B_BLK, D_dyn), lambda i: (0, i, 0)),   # x
            pl.BlockSpec((B_BLK, 1), lambda i: (i, 0)),             # lengths
            pl.BlockSpec((B_BLK, D_stat), lambda i: (i, 0)),        # static
            resident, resident, resident,                            # w_ih, w_hh, vec
            resident, resident, resident, resident,                  # w1..w4
        ],
        out_specs=pl.BlockSpec((B_BLK, out_pad), lambda i: (i, 0)),
        scratch_shapes=[pltpu.VMEM((T, B_BLK, G), jnp.bfloat16)],
        compiler_params=pltpu.CompilerParams(
            dimension_semantics=("parallel",),     # v7x: batch blocks across 2 TCs
            vmem_limit_bytes=32 * 1024 * 1024),
    )(x, lengths_p, static_p,
      packed["w_ih"], packed["w_hh"], packed["vec"],
      packed["w1"], packed["w2"], packed["w3"], packed["w4"])
    return out[:B, :out_features]


# ----------------------------------------------------------------------------
# Pure-JAX reference (mirrors the PyTorch module) and parameter init
# ----------------------------------------------------------------------------
def losnet_reference(params, dynamic_x_tbd, lengths, static_x, hidden_size, out_features):
    T, B, _ = dynamic_x_tbd.shape
    H = hidden_size
    w_ih, w_hh, b = params["w_ih"], params["w_hh"], params["b_lstm"]
    h = jnp.zeros((B, H), jnp.float32)
    c = jnp.zeros((B, H), jnp.float32)
    for t in range(T):
        g = dynamic_x_tbd[t] @ w_ih + h @ w_hh + b      # (B, 4H), order i|f|g|o
        i_g = jax.nn.sigmoid(g[:, 0:H])
        f_g = jax.nn.sigmoid(g[:, H:2 * H])
        g_g = jnp.tanh(g[:, 2 * H:3 * H])
        o_g = jax.nn.sigmoid(g[:, 3 * H:4 * H])
        c_new = f_g * c + i_g * g_g
        h_new = o_g * jnp.tanh(c_new)
        valid = (lengths > t)[:, None]
        h = jnp.where(valid, h_new, h)
        c = jnp.where(valid, c_new, c)
    ht = _layer_norm(h, params["ln_ht_g"], params["ln_ht_b"])
    z = jnp.concatenate([ht, static_x], axis=1)
    z = _layer_norm(z, params["ln1_g"], params["ln1_b"])
    z = z @ params["w1"] + params["b1"]
    z = jax.nn.relu(_layer_norm(z, params["ln2_g"], params["ln2_b"]))
    z = z @ params["w2"] + params["b2"]
    z = jax.nn.relu(_layer_norm(z, params["ln3_g"], params["ln3_b"]))
    z = z @ params["w3"] + params["b3"]
    z = jax.nn.relu(_layer_norm(z, params["ln4_g"], params["ln4_b"]))
    z = z @ params["w4"] + params["b4"]
    return z[:, :out_features]


def init_params(key, dynamic_input_size, static_input_size, hidden_size, out_features):
    H = hidden_size
    comb = hidden_size + static_input_size
    ks = jax.random.split(key, 12)

    def rn(k, shape, scale=0.1):
        return jax.random.normal(k, shape, jnp.float32) * scale

    return {
        # LSTM weights stored transposed: (in, 4H) / (H, 4H); gate order i,f,g,o
        "w_ih": rn(ks[0], (dynamic_input_size, 4 * H)),
        "w_hh": rn(ks[1], (H, 4 * H)),
        "b_lstm": rn(ks[2], (1, 4 * H)),          # b_ih + b_hh combined
        "ln_ht_g": jnp.ones((1, H), jnp.float32),
        "ln_ht_b": jnp.zeros((1, H), jnp.float32),
        "ln1_g": jnp.ones((1, comb), jnp.float32),
        "ln1_b": jnp.zeros((1, comb), jnp.float32),
        "w1": rn(ks[3], (comb, 50)),
        "b1": rn(ks[4], (1, 50)),
        "ln2_g": jnp.ones((1, 50), jnp.float32),
        "ln2_b": jnp.zeros((1, 50), jnp.float32),
        "w2": rn(ks[5], (50, 20)),
        "b2": rn(ks[6], (1, 20)),
        "ln3_g": jnp.ones((1, 20), jnp.float32),
        "ln3_b": jnp.zeros((1, 20), jnp.float32),
        "w3": rn(ks[7], (20, 10)),
        "b3": rn(ks[8], (1, 10)),
        "ln4_g": jnp.ones((1, 10), jnp.float32),
        "ln4_b": jnp.zeros((1, 10), jnp.float32),
        "w4": rn(ks[9], (10, out_features)),
        "b4": rn(ks[10], (1, out_features)),
    }


if __name__ == "__main__":
    # Small, module-consistent shapes ("32-hidden" variant).
    B = 4                    # batch
    T = 8                    # max sequence length (padded)
    DYN = 6                  # dynamic_input_size
    STAT = 8                 # static_input_size
    H = 32                   # hidden_size
    OUT = 1                  # out_features

    key = jax.random.PRNGKey(0)
    k_params, k_dyn, k_stat = jax.random.split(key, 3)

    params = init_params(k_params, DYN, STAT, H, OUT)
    packed = prepare_params(params, hidden_size=H, out_features=OUT)

    # Padded dynamic batch in time-major layout (T, B, DYN); per-sample lengths
    # emulate the packed padded sequence input.
    dynamic_x = jax.random.normal(k_dyn, (T, B, DYN), jnp.float32)
    lengths = jnp.array([8, 6, 5, 3], dtype=jnp.int32)
    static_x = jax.random.normal(k_stat, (B, STAT), jnp.float32)

    y_pred = losnet_forward(dynamic_x, lengths, static_x, packed, OUT)
    y_pred = jax.block_until_ready(y_pred)
    assert y_pred.shape == (B, OUT)

    # Numerical sanity check vs. a pure-JAX f32 reference (loose tolerance for
    # the bf16 weight/input quantization in the kernel).
    y_ref = losnet_reference(params, dynamic_x, lengths, static_x, H, OUT)
    assert float(jnp.max(jnp.abs(y_pred - y_ref))) < 5e-2

    print("KERNEL_OK")
</pallas_src>

<mosaic_0001>
module attributes {stable_mosaic.version = 11 : i64} {
  func.func @kernel(%arg0: i32, %arg1: memref<8x16x6xbf16, #tpu.memory_space<vmem>>, %arg2: memref<16x1xi32, #tpu.memory_space<vmem>>, %arg3: memref<16x8xf32, #tpu.memory_space<vmem>>, %arg4: memref<6x128xbf16, #tpu.memory_space<vmem>>, %arg5: memref<32x128xbf16, #tpu.memory_space<vmem>>, %arg6: memref<1x1920xf32, #tpu.memory_space<vmem>>, %arg7: memref<40x50xf32, #tpu.memory_space<vmem>>, %arg8: memref<50x20xf32, #tpu.memory_space<vmem>>, %arg9: memref<20x10xf32, #tpu.memory_space<vmem>>, %arg10: memref<10x128xf32, #tpu.memory_space<vmem>>, %arg11: memref<16x128xf32, #tpu.memory_space<vmem>>, %arg12: memref<8x16x128xbf16, #tpu.memory_space<vmem>>) attributes {dimension_semantics = [#tpu.dimension_semantics<parallel>], iteration_bounds = array<i64: 1>, scalar_prefetch = 0 : i64, scratch_operands = 1 : i64, tpu.core_type = #tpu.core_type<tc>, window_params = [{transform_indices = @transform_0, window_bounds = array<i64: 8, 16, 6>}, {transform_indices = @transform_1, window_bounds = array<i64: 16, 1>}, {transform_indices = @transform_2, window_bounds = array<i64: 16, 8>}, {pipeline_mode = #tpu.pipeline_mode<synchronous>, transform_indices = @transform_3, window_bounds = array<i64: 6, 128>}, {pipeline_mode = #tpu.pipeline_mode<synchronous>, transform_indices = @transform_4, window_bounds = array<i64: 32, 128>}, {pipeline_mode = #tpu.pipeline_mode<synchronous>, transform_indices = @transform_5, window_bounds = array<i64: 1, 1920>}, {pipeline_mode = #tpu.pipeline_mode<synchronous>, transform_indices = @transform_6, window_bounds = array<i64: 40, 50>}, {pipeline_mode = #tpu.pipeline_mode<synchronous>, transform_indices = @transform_7, window_bounds = array<i64: 50, 20>}, {pipeline_mode = #tpu.pipeline_mode<synchronous>, transform_indices = @transform_8, window_bounds = array<i64: 20, 10>}, {pipeline_mode = #tpu.pipeline_mode<synchronous>, transform_indices = @transform_9, window_bounds = array<i64: 10, 128>}, {transform_indices = @transform_10, window_bounds = array<i64: 16, 128>}]} {
    %c0 = arith.constant 0 : index
    %c0_0 = arith.constant 0 : index
    %c0_1 = arith.constant 0 : index
    %0 = vector.load %arg1[%c0, %c0_0, %c0_1] : memref<8x16x6xbf16, #tpu.memory_space<vmem>>, vector<8x16x6xbf16>
    %1 = vector.shape_cast %0 : vector<8x16x6xbf16> to vector<128x6xbf16>
    %c0_2 = arith.constant 0 : index
    %c0_3 = arith.constant 0 : index
    %2 = vector.load %arg4[%c0_2, %c0_3] : memref<6x128xbf16, #tpu.memory_space<vmem>>, vector<6x128xbf16>
    %cst = arith.constant dense<0.000000e+00> : vector<128x128xf32>
    %3 = tpu.matmul %1, %2, %cst {dimension_numbers = #tpu.dot_dimension_numbers<[1], [0], [0], [1], [0, 0, 1, 1], [], []>} : vector<128x6xbf16>, vector<6x128xbf16>, vector<128x128xf32> -> vector<128x128xf32>
    %c0_4 = arith.constant 0 : index
    %c0_5 = arith.constant 0 : index
    %4 = vector.load %arg6[%c0_4, %c0_5] : memref<1x1920xf32, #tpu.memory_space<vmem>>, vector<1x128xf32>
    %5 = vector.broadcast %4 : vector<1x128xf32> to vector<128x128xf32>
    %6 = arith.addf %3, %5 : vector<128x128xf32>
    %7 = vector.shape_cast %6 : vector<128x128xf32> to vector<8x16x128xf32>
    %8 = arith.truncf %7 : vector<8x16x128xf32> to vector<8x16x128xbf16>
    %c0_6 = arith.constant 0 : index
    %c0_7 = arith.constant 0 : index
    %c0_8 = arith.constant 0 : index
    %9 = vector.load %arg12[%c0_6, %c0_7, %c0_8] : memref<8x16x128xbf16, #tpu.memory_space<vmem>>, vector<8x16x128xbf16>
    tpu.vector_store %arg12[%c0_6, %c0_7, %c0_8], %8 {strides = array<i32>} : memref<8x16x128xbf16, #tpu.memory_space<vmem>>, vector<8x16x128xbf16>,
    %c0_9 = arith.constant 0 : index
    %c0_10 = arith.constant 0 : index
    %10 = vector.load %arg2[%c0_9, %c0_10] : memref<16x1xi32, #tpu.memory_space<vmem>>, vector<16x1xi32>
    %11 = vector.shape_cast %10 : vector<16x1xi32> to vector<16x1xi32>
    %12 = vector.broadcast %11 : vector<16x1xi32> to vector<16x32xi32>
    %cst_11 = arith.constant 0.000000e+00 : f32
    %13 = vector.broadcast %cst_11 : f32 to vector<16x32xf32>
    %cst_12 = arith.constant 0.000000e+00 : f32
    %14 = vector.broadcast %cst_12 : f32 to vector<16x32xf32>
    %c0_i32 = arith.constant 0 : i32
    %15 = arith.index_cast %c0_i32 : i32 to index
    %c0_13 = arith.constant 0 : index
    %c0_14 = arith.constant 0 : index
    %16 = vector.load %arg12[%15, %c0_13, %c0_14] : memref<8x16x128xbf16, #tpu.memory_space<vmem>>, vector<1x16x128xbf16>
    %17 = vector.shape_cast %16 : vector<1x16x128xbf16> to vector<16x128xbf16>
    %18 = arith.truncf %13 : vector<16x32xf32> to vector<16x32xbf16>
    %c0_15 = arith.constant 0 : index
    %c0_16 = arith.constant 0 : index
    %19 = vector.load %arg5[%c0_15, %c0_16] : memref<32x128xbf16, #tpu.memory_space<vmem>>, vector<32x128xbf16>
    %cst_17 = arith.constant dense<0.000000e+00> : vector<16x128xf32>
    %20 = tpu.matmul %18, %19, %cst_17 {dimension_numbers = #tpu.dot_dimension_numbers<[1], [0], [0], [1], [0, 0, 1, 1], [], []>} : vector<16x32xbf16>, vector<32x128xbf16>, vector<16x128xf32> -> vector<16x128xf32>
    %21 = arith.extf %17 : vector<16x128xbf16> to vector<16x128xf32>
    %22 = arith.addf %21, %20 : vector<16x128xf32>
    %23 = vector.extract_strided_slice %22 {offsets = [0, 0], sizes = [16, 96], strides = [1, 1]} : vector<16x128xf32> to vector<16x96xf32>
    %24 = arith.negf %23 : vector<16x96xf32>
    %25 = math.exp %24 : vector<16x96xf32>
    %cst_18 = arith.constant 1.000000e+00 : f32
    %26 = vector.broadcast %cst_18 : f32 to vector<16x96xf32>
    %27 = arith.addf %26, %25 : vector<16x96xf32>
    %28 = arith.divf %26, %27 : vector<16x96xf32>
    %29 = vector.extract_strided_slice %28 {offsets = [0, 0], sizes = [16, 32], strides = [1, 1]} : vector<16x96xf32> to vector<16x32xf32>
    %30 = vector.extract_strided_slice %28 {offsets = [0, 32], sizes = [16, 32], strides = [1, 1]} : vector<16x96xf32> to vector<16x32xf32>
    %31 = vector.extract_strided_slice %28 {offsets = [0, 64], sizes = [16, 32], strides = [1, 1]} : vector<16x96xf32> to vector<16x32xf32>
    %32 = vector.extract_strided_slice %22 {offsets = [0, 96], sizes = [16, 32], strides = [1, 1]} : vector<16x128xf32> to vector<16x32xf32>
    %33 = math.tanh %32 : vector<16x32xf32>
    %34 = arith.mulf %30, %14 : vector<16x32xf32>
    %35 = arith.mulf %29, %33 : vector<16x32xf32>
    %36 = arith.addf %34, %35 : vector<16x32xf32>
    %37 = math.tanh %36 : vector<16x32xf32>
    %38 = arith.mulf %31, %37 : vector<16x32xf32>
    %39 = vector.broadcast %c0_i32 : i32 to vector<16x32xi32>
    %40 = arith.cmpi sgt, %12, %39 : vector<16x32xi32>
    %41 = arith.select %40, %38, %13 : vector<16x32xi1>, vector<16x32xf32>
    %42 = arith.select %40, %36, %14 : vector<16x32xi1>, vector<16x32xf32>
    %c1_i32 = arith.constant 1 : i32
    %43 = arith.index_cast %c1_i32 : i32 to index
    %c0_19 = arith.constant 0 : index
    %c0_20 = arith.constant 0 : index
    %44 = vector.load %arg12[%43, %c0_19, %c0_20] : memref<8x16x128xbf16, #tpu.memory_space<vmem>>, vector<1x16x128xbf16>
    %45 = vector.shape_cast %44 : vector<1x16x128xbf16> to vector<16x128xbf16>
    %46 = arith.truncf %41 : vector<16x32xf32> to vector<16x32xbf16>
    %c0_21 = arith.constant 0 : index
    %c0_22 = arith.constant 0 : index
    %47 = vector.load %arg5[%c0_21, %c0_22] : memref<32x128xbf16, #tpu.memory_space<vmem>>, vector<32x128xbf16>
    %cst_23 = arith.constant dense<0.000000e+00> : vector<16x128xf32>
    %48 = tpu.matmul %46, %47, %cst_23 {dimension_numbers = #tpu.dot_dimension_numbers<[1], [0], [0], [1], [0, 0, 1, 1], [], []>} : vector<16x32xbf16>, vector<32x128xbf16>, vector<16x128xf32> -> vector<16x128xf32>
    %49 = arith.extf %45 : vector<16x128xbf16> to vector<16x128xf32>
    %50 = arith.addf %49, %48 : vector<16x128xf32>
    %51 = vector.extract_strided_slice %50 {offsets = [0, 0], sizes = [16, 96], strides = [1, 1]} : vector<16x128xf32> to vector<16x96xf32>
    %52 = arith.negf %51 : vector<16x96xf32>
    %53 = math.exp %52 : vector<16x96xf32>
    %cst_24 = arith.constant 1.000000e+00 : f32
    %54 = vector.broadcast %cst_24 : f32 to vector<16x96xf32>
    %55 = arith.addf %54, %53 : vector<16x96xf32>
    %56 = arith.divf %54, %55 : vector<16x96xf32>
    %57 = vector.extract_strided_slice %56 {offsets = [0, 0], sizes = [16, 32], strides = [1, 1]} : vector<16x96xf32> to vector<16x32xf32>
    %58 = vector.extract_strided_slice %56 {offsets = [0, 32], sizes = [16, 32], strides = [1, 1]} : vector<16x96xf32> to vector<16x32xf32>
    %59 = vector.extract_strided_slice %56 {offsets = [0, 64], sizes = [16, 32], strides = [1, 1]} : vector<16x96xf32> to vector<16x32xf32>
    %60 = vector.extract_strided_slice %50 {offsets = [0, 96], sizes = [16, 32], strides = [1, 1]} : vector<16x128xf32> to vector<16x32xf32>
    %61 = math.tanh %60 : vector<16x32xf32>
    %62 = arith.mulf %58, %42 : vector<16x32xf32>
    %63 = arith.mulf %57, %61 : vector<16x32xf32>
    %64 = arith.addf %62, %63 : vector<16x32xf32>
    %65 = math.tanh %64 : vector<16x32xf32>
    %66 = arith.mulf %59, %65 : vector<16x32xf32>
    %67 = vector.broadcast %c1_i32 : i32 to vector<16x32xi32>
    %68 = arith.cmpi sgt, %12, %67 : vector<16x32xi32>
    %69 = arith.select %68, %66, %41 : vector<16x32xi1>, vector<16x32xf32>
    %70 = arith.select %68, %64, %42 : vector<16x32xi1>, vector<16x32xf32>
    %c2_i32 = arith.constant 2 : i32
    %71 = arith.index_cast %c2_i32 : i32 to index
    %c0_25 = arith.constant 0 : index
    %c0_26 = arith.constant 0 : index
    %72 = vector.load %arg12[%71, %c0_25, %c0_26] : memref<8x16x128xbf16, #tpu.memory_space<vmem>>, vector<1x16x128xbf16>
    %73 = vector.shape_cast %72 : vector<1x16x128xbf16> to vector<16x128xbf16>
    %74 = arith.truncf %69 : vector<16x32xf32> to vector<16x32xbf16>
    %c0_27 = arith.constant 0 : index
    %c0_28 = arith.constant 0 : index
    %75 = vector.load %arg5[%c0_27, %c0_28] : memref<32x128xbf16, #tpu.memory_space<vmem>>, vector<32x128xbf16>
    %cst_29 = arith.constant dense<0.000000e+00> : vector<16x128xf32>
    %76 = tpu.matmul %74, %75, %cst_29 {dimension_numbers = #tpu.dot_dimension_numbers<[1], [0], [0], [1], [0, 0, 1, 1], [], []>} : vector<16x32xbf16>, vector<32x128xbf16>, vector<16x128xf32> -> vector<16x128xf32>
    %77 = arith.extf %73 : vector<16x128xbf16> to vector<16x128xf32>
    %78 = arith.addf %77, %76 : vector<16x128xf32>
    %79 = vector.extract_strided_slice %78 {offsets = [0, 0], sizes = [16, 96], strides = [1, 1]} : vector<16x128xf32> to vector<16x96xf32>
    %80 = arith.negf %79 : vector<16x96xf32>
    %81 = math.exp %80 : vector<16x96xf32>
    %cst_30 = arith.constant 1.000000e+00 : f32
    %82 = vector.broadcast %cst_30 : f32 to vector<16x96xf32>
    %83 = arith.addf %82, %81 : vector<16x96xf32>
    %84 = arith.divf %82, %83 : vector<16x96xf32>
    %85 = vector.extract_strided_slice %84 {offsets = [0, 0], sizes = [16, 32], strides = [1, 1]} : vector<16x96xf32> to vector<16x32xf32>
    %86 = vector.extract_strided_slice %84 {offsets = [0, 32], sizes = [16, 32], strides = [1, 1]} : vector<16x96xf32> to vector<16x32xf32>
    %87 = vector.extract_strided_slice %84 {offsets = [0, 64], sizes = [16, 32], strides = [1, 1]} : vector<16x96xf32> to vector<16x32xf32>
    %88 = vector.extract_strided_slice %78 {offsets = [0, 96], sizes = [16, 32], strides = [1, 1]} : vector<16x128xf32> to vector<16x32xf32>
    %89 = math.tanh %88 : vector<16x32xf32>
    %90 = arith.mulf %86, %70 : vector<16x32xf32>
    %91 = arith.mulf %85, %89 : vector<16x32xf32>
    %92 = arith.addf %90, %91 : vector<16x32xf32>
    %93 = math.tanh %92 : vector<16x32xf32>
    %94 = arith.mulf %87, %93 : vector<16x32xf32>
    %95 = vector.broadcast %c2_i32 : i32 to vector<16x32xi32>
    %96 = arith.cmpi sgt, %12, %95 : vector<16x32xi32>
    %97 = arith.select %96, %94, %69 : vector<16x32xi1>, vector<16x32xf32>
    %98 = arith.select %96, %92, %70 : vector<16x32xi1>, vector<16x32xf32>
    %c3_i32 = arith.constant 3 : i32
    %99 = arith.index_cast %c3_i32 : i32 to index
    %c0_31 = arith.constant 0 : index
    %c0_32 = arith.constant 0 : index
    %100 = vector.load %arg12[%99, %c0_31, %c0_32] : memref<8x16x128xbf16, #tpu.memory_space<vmem>>, vector<1x16x128xbf16>
    %101 = vector.shape_cast %100 : vector<1x16x128xbf16> to vector<16x128xbf16>
    %102 = arith.truncf %97 : vector<16x32xf32> to vector<16x32xbf16>
    %c0_33 = arith.constant 0 : index
    %c0_34 = arith.constant 0 : index
    %103 = vector.load %arg5[%c0_33, %c0_34] : memref<32x128xbf16, #tpu.memory_space<vmem>>, vector<32x128xbf16>
    %cst_35 = arith.constant dense<0.000000e+00> : vector<16x128xf32>
    %104 = tpu.matmul %102, %103, %cst_35 {dimension_numbers = #tpu.dot_dimension_numbers<[1], [0], [0], [1], [0, 0, 1, 1], [], []>} : vector<16x32xbf16>, vector<32x128xbf16>, vector<16x128xf32> -> vector<16x128xf32>
    %105 = arith.extf %101 : vector<16x128xbf16> to vector<16x128xf32>
    %106 = arith.addf %105, %104 : vector<16x128xf32>
    %107 = vector.extract_strided_slice %106 {offsets = [0, 0], sizes = [16, 96], strides = [1, 1]} : vector<16x128xf32> to vector<16x96xf32>
    %108 = arith.negf %107 : vector<16x96xf32>
    %109 = math.exp %108 : vector<16x96xf32>
    %cst_36 = arith.constant 1.000000e+00 : f32
    %110 = vector.broadcast %cst_36 : f32 to vector<16x96xf32>
    %111 = arith.addf %110, %109 : vector<16x96xf32>
    %112 = arith.divf %110, %111 : vector<16x96xf32>
    %113 = vector.extract_strided_slice %112 {offsets = [0, 0], sizes = [16, 32], strides = [1, 1]} : vector<16x96xf32> to vector<16x32xf32>
    %114 = vector.extract_strided_slice %112 {offsets = [0, 32], sizes = [16, 32], strides = [1, 1]} : vector<16x96xf32> to vector<16x32xf32>
    %115 = vector.extract_strided_slice %112 {offsets = [0, 64], sizes = [16, 32], strides = [1, 1]} : vector<16x96xf32> to vector<16x32xf32>
    %116 = vector.extract_strided_slice %106 {offsets = [0, 96], sizes = [16, 32], strides = [1, 1]} : vector<16x128xf32> to vector<16x32xf32>
    %117 = math.tanh %116 : vector<16x32xf32>
    %118 = arith.mulf %114, %98 : vector<16x32xf32>
    %119 = arith.mulf %113, %117 : vector<16x32xf32>
    %120 = arith.addf %118, %119 : vector<16x32xf32>
    %121 = math.tanh %120 : vector<16x32xf32>
    %122 = arith.mulf %115, %121 : vector<16x32xf32>
    %123 = vector.broadcast %c3_i32 : i32 to vector<16x32xi32>
    %124 = arith.cmpi sgt, %12, %123 : vector<16x32xi32>
    %125 = arith.select %124, %122, %97 : vector<16x32xi1>, vector<16x32xf32>
    %126 = arith.select %124, %120, %98 : vector<16x32xi1>, vector<16x32xf32>
    %c4_i32 = arith.constant 4 : i32
    %127 = arith.index_cast %c4_i32 : i32 to index
    %c0_37 = arith.constant 0 : index
    %c0_38 = arith.constant 0 : index
    %128 = vector.load %arg12[%127, %c0_37, %c0_38] : memref<8x16x128xbf16, #tpu.memory_space<vmem>>, vector<1x16x128xbf16>
    %129 = vector.shape_cast %128 : vector<1x16x128xbf16> to vector<16x128xbf16>
    %130 = arith.truncf %125 : vector<16x32xf32> to vector<16x32xbf16>
    %c0_39 = arith.constant 0 : index
    %c0_40 = arith.constant 0 : index
    %131 = vector.load %arg5[%c0_39, %c0_40] : memref<32x128xbf16, #tpu.memory_space<vmem>>, vector<32x128xbf16>
    %cst_41 = arith.constant dense<0.000000e+00> : vector<16x128xf32>
    %132 = tpu.matmul %130, %131, %cst_41 {dimension_numbers = #tpu.dot_dimension_numbers<[1], [0], [0], [1], [0, 0, 1, 1], [], []>} : vector<16x32xbf16>, vector<32x128xbf16>, vector<16x128xf32> -> vector<16x128xf32>
    %133 = arith.extf %129 : vector<16x128xbf16> to vector<16x128xf32>
    %134 = arith.addf %133, %132 : vector<16x128xf32>
    %135 = vector.extract_strided_slice %134 {offsets = [0, 0], sizes = [16, 96], strides = [1, 1]} : vector<16x128xf32> to vector<16x96xf32>
    %136 = arith.negf %135 : vector<16x96xf32>
    %137 = math.exp %136 : vector<16x96xf32>
    %cst_42 = arith.constant 1.000000e+00 : f32
    %138 = vector.broadcast %cst_42 : f32 to vector<16x96xf32>
    %139 = arith.addf %138, %137 : vector<16x96xf32>
    %140 = arith.divf %138, %139 : vector<16x96xf32>
    %141 = vector.extract_strided_slice %140 {offsets = [0, 0], sizes = [16, 32], strides = [1, 1]} : vector<16x96xf32> to vector<16x32xf32>
    %142 = vector.extract_strided_slice %140 {offsets = [0, 32], sizes = [16, 32], strides = [1, 1]} : vector<16x96xf32> to vector<16x32xf32>
    %143 = vector.extract_strided_slice %140 {offsets = [0, 64], sizes = [16, 32], strides = [1, 1]} : vector<16x96xf32> to vector<16x32xf32>
    %144 = vector.extract_strided_slice %134 {offsets = [0, 96], sizes = [16, 32], strides = [1, 1]} : vector<16x128xf32> to vector<16x32xf32>
    %145 = math.tanh %144 : vector<16x32xf32>
    %146 = arith.mulf %142, %126 : vector<16x32xf32>
    %147 = arith.mulf %141, %145 : vector<16x32xf32>
    %148 = arith.addf %146, %147 : vector<16x32xf32>
    %149 = math.tanh %148 : vector<16x32xf32>
    %150 = arith.mulf %143, %149 : vector<16x32xf32>
    %151 = vector.broadcast %c4_i32 : i32 to vector<16x32xi32>
    %152 = arith.cmpi sgt, %12, %151 : vector<16x32xi32>
    %153 = arith.select %152, %150, %125 : vector<16x32xi1>, vector<16x32xf32>
    %154 = arith.select %152, %148, %126 : vector<16x32xi1>, vector<16x32xf32>
    %c5_i32 = arith.constant 5 : i32
    %155 = arith.index_cast %c5_i32 : i32 to index
    %c0_43 = arith.constant 0 : index
    %c0_44 = arith.constant 0 : index
    %156 = vector.load %arg12[%155, %c0_43, %c0_44] : memref<8x16x128xbf16, #tpu.memory_space<vmem>>, vector<1x16x128xbf16>
    %157 = vector.shape_cast %156 : vector<1x16x128xbf16> to vector<16x128xbf16>
    %158 = arith.truncf %153 : vector<16x32xf32> to vector<16x32xbf16>
    %c0_45 = arith.constant 0 : index
    %c0_46 = arith.constant 0 : index
    %159 = vector.load %arg5[%c0_45, %c0_46] : memref<32x128xbf16, #tpu.memory_space<vmem>>, vector<32x128xbf16>
    %cst_47 = arith.constant dense<0.000000e+00> : vector<16x128xf32>
    %160 = tpu.matmul %158, %159, %cst_47 {dimension_numbers = #tpu.dot_dimension_numbers<[1], [0], [0], [1], [0, 0, 1, 1], [], []>} : vector<16x32xbf16>, vector<32x128xbf16>, vector<16x128xf32> -> vector<16x128xf32>
    %161 = arith.extf %157 : vector<16x128xbf16> to vector<16x128xf32>
    %162 = arith.addf %161, %160 : vector<16x128xf32>
    %163 = vector.extract_strided_slice %162 {offsets = [0, 0], sizes = [16, 96], strides = [1, 1]} : vector<16x128xf32> to vector<16x96xf32>
    %164 = arith.negf %163 : vector<16x96xf32>
    %165 = math.exp %164 : vector<16x96xf32>
    %cst_48 = arith.constant 1.000000e+00 : f32
    %166 = vector.broadcast %cst_48 : f32 to vector<16x96xf32>
    %167 = arith.addf %166, %165 : vector<16x96xf32>
    %168 = arith.divf %166, %167 : vector<16x96xf32>
    %169 = vector.extract_strided_slice %168 {offsets = [0, 0], sizes = [16, 32], strides = [1, 1]} : vector<16x96xf32> to vector<16x32xf32>
    %170 = vector.extract_strided_slice %168 {offsets = [0, 32], sizes = [16, 32], strides = [1, 1]} : vector<16x96xf32> to vector<16x32xf32>
    %171 = vector.extract_strided_slice %168 {offsets = [0, 64], sizes = [16, 32], strides = [1, 1]} : vector<16x96xf32> to vector<16x32xf32>
    %172 = vector.extract_strided_slice %162 {offsets = [0, 96], sizes = [16, 32], strides = [1, 1]} : vector<16x128xf32> to vector<16x32xf32>
    %173 = math.tanh %172 : vector<16x32xf32>
    %174 = arith.mulf %170, %154 : vector<16x32xf32>
    %175 = arith.mulf %169, %173 : vector<16x32xf32>
    %176 = arith.addf %174, %175 : vector<16x32xf32>
    %177 = math.tanh %176 : vector<16x32xf32>
    %178 = arith.mulf %171, %177 : vector<16x32xf32>
    %179 = vector.broadcast %c5_i32 : i32 to vector<16x32xi32>
    %180 = arith.cmpi sgt, %12, %179 : vector<16x32xi32>
    %181 = arith.select %180, %178, %153 : vector<16x32xi1>, vector<16x32xf32>
    %182 = arith.select %180, %176, %154 : vector<16x32xi1>, vector<16x32xf32>
    %c6_i32 = arith.constant 6 : i32
    %183 = arith.index_cast %c6_i32 : i32 to index
    %c0_49 = arith.constant 0 : index
    %c0_50 = arith.constant 0 : index
    %184 = vector.load %arg12[%183, %c0_49, %c0_50] : memref<8x16x128xbf16, #tpu.memory_space<vmem>>, vector<1x16x128xbf16>
    %185 = vector.shape_cast %184 : vector<1x16x128xbf16> to vector<16x128xbf16>
    %186 = arith.truncf %181 : vector<16x32xf32> to vector<16x32xbf16>
    %c0_51 = arith.constant 0 : index
    %c0_52 = arith.constant 0 : index
    %187 = vector.load %arg5[%c0_51, %c0_52] : memref<32x128xbf16, #tpu.memory_space<vmem>>, vector<32x128xbf16>
    %cst_53 = arith.constant dense<0.000000e+00> : vector<16x128xf32>
    %188 = tpu.matmul %186, %187, %cst_53 {dimension_numbers = #tpu.dot_dimension_numbers<[1], [0], [0], [1], [0, 0, 1, 1], [], []>} : vector<16x32xbf16>, vector<32x128xbf16>, vector<16x128xf32> -> vector<16x128xf32>
    %189 = arith.extf %185 : vector<16x128xbf16> to vector<16x128xf32>
    %190 = arith.addf %189, %188 : vector<16x128xf32>
    %191 = vector.extract_strided_slice %190 {offsets = [0, 0], sizes = [16, 96], strides = [1, 1]} : vector<16x128xf32> to vector<16x96xf32>
    %192 = arith.negf %191 : vector<16x96xf32>
    %193 = math.exp %192 : vector<16x96xf32>
    %cst_54 = arith.constant 1.000000e+00 : f32
    %194 = vector.broadcast %cst_54 : f32 to vector<16x96xf32>
    %195 = arith.addf %194, %193 : vector<16x96xf32>
    %196 = arith.divf %194, %195 : vector<16x96xf32>
    %197 = vector.extract_strided_slice %196 {offsets = [0, 0], sizes = [16, 32], strides = [1, 1]} : vector<16x96xf32> to vector<16x32xf32>
    %198 = vector.extract_strided_slice %196 {offsets = [0, 32], sizes = [16, 32], strides = [1, 1]} : vector<16x96xf32> to vector<16x32xf32>
    %199 = vector.extract_strided_slice %196 {offsets = [0, 64], sizes = [16, 32], strides = [1, 1]} : vector<16x96xf32> to vector<16x32xf32>
    %200 = vector.extract_strided_slice %190 {offsets = [0, 96], sizes = [16, 32], strides = [1, 1]} : vector<16x128xf32> to vector<16x32xf32>
    %201 = math.tanh %200 : vector<16x32xf32>
    %202 = arith.mulf %198, %182 : vector<16x32xf32>
    %203 = arith.mulf %197, %201 : vector<16x32xf32>
    %204 = arith.addf %202, %203 : vector<16x32xf32>
    %205 = math.tanh %204 : vector<16x32xf32>
    %206 = arith.mulf %199, %205 : vector<16x32xf32>
    %207 = vector.broadcast %c6_i32 : i32 to vector<16x32xi32>
    %208 = arith.cmpi sgt, %12, %207 : vector<16x32xi32>
    %209 = arith.select %208, %206, %181 : vector<16x32xi1>, vector<16x32xf32>
    %210 = arith.select %208, %204, %182 : vector<16x32xi1>, vector<16x32xf32>
    %c7_i32 = arith.constant 7 : i32
    %211 = arith.index_cast %c7_i32 : i32 to index
    %c0_55 = arith.constant 0 : index
    %c0_56 = arith.constant 0 : index
    %212 = vector.load %arg12[%211, %c0_55, %c0_56] : memref<8x16x128xbf16, #tpu.memory_space<vmem>>, vector<1x16x128xbf16>
    %213 = vector.shape_cast %212 : vector<1x16x128xbf16> to vector<16x128xbf16>
    %214 = arith.truncf %209 : vector<16x32xf32> to vector<16x32xbf16>
    %c0_57 = arith.constant 0 : index
    %c0_58 = arith.constant 0 : index
    %215 = vector.load %arg5[%c0_57, %c0_58] : memref<32x128xbf16, #tpu.memory_space<vmem>>, vector<32x128xbf16>
    %cst_59 = arith.constant dense<0.000000e+00> : vector<16x128xf32>
    %216 = tpu.matmul %214, %215, %cst_59 {dimension_numbers = #tpu.dot_dimension_numbers<[1], [0], [0], [1], [0, 0, 1, 1], [], []>} : vector<16x32xbf16>, vector<32x128xbf16>, vector<16x128xf32> -> vector<16x128xf32>
    %217 = arith.extf %213 : vector<16x128xbf16> to vector<16x128xf32>
    %218 = arith.addf %217, %216 : vector<16x128xf32>
    %219 = vector.extract_strided_slice %218 {offsets = [0, 0], sizes = [16, 96], strides = [1, 1]} : vector<16x128xf32> to vector<16x96xf32>
    %220 = arith.negf %219 : vector<16x96xf32>
    %221 = math.exp %220 : vector<16x96xf32>
    %cst_60 = arith.constant 1.000000e+00 : f32
    %222 = vector.broadcast %cst_60 : f32 to vector<16x96xf32>
    %223 = arith.addf %222, %221 : vector<16x96xf32>
    %224 = arith.divf %222, %223 : vector<16x96xf32>
    %225 = vector.extract_strided_slice %224 {offsets = [0, 0], sizes = [16, 32], strides = [1, 1]} : vector<16x96xf32> to vector<16x32xf32>
    %226 = vector.extract_strided_slice %224 {offsets = [0, 32], sizes = [16, 32], strides = [1, 1]} : vector<16x96xf32> to vector<16x32xf32>
    %227 = vector.extract_strided_slice %224 {offsets = [0, 64], sizes = [16, 32], strides = [1, 1]} : vector<16x96xf32> to vector<16x32xf32>
    %228 = vector.extract_strided_slice %218 {offsets = [0, 96], sizes = [16, 32], strides = [1, 1]} : vector<16x128xf32> to vector<16x32xf32>
    %229 = math.tanh %228 : vector<16x32xf32>
    %230 = arith.mulf %226, %210 : vector<16x32xf32>
    %231 = arith.mulf %225, %229 : vector<16x32xf32>
    %232 = arith.addf %230, %231 : vector<16x32xf32>
    %233 = math.tanh %232 : vector<16x32xf32>
    %234 = arith.mulf %227, %233 : vector<16x32xf32>
    %235 = vector.broadcast %c7_i32 : i32 to vector<16x32xi32>
    %236 = arith.cmpi sgt, %12, %235 : vector<16x32xi32>
    %237 = arith.select %236, %234, %209 : vector<16x32xi1>, vector<16x32xf32>
    %238 = arith.select %236, %232, %210 : vector<16x32xi1>, vector<16x32xf32>
    %c8_i32 = arith.constant 8 : i32
    %c0_61 = arith.constant 0 : index
    %c128 = arith.constant 128 : index
    %239 = vector.load %arg6[%c0_61, %c128] : memref<1x1920xf32, #tpu.memory_space<vmem>>, vector<1x32xf32>
    %c0_62 = arith.constant 0 : index
    %c256 = arith.constant 256 : index
    %240 = vector.load %arg6[%c0_62, %c256] : memref<1x1920xf32, #tpu.memory_space<vmem>>, vector<1x32xf32>
    %cst_63 = arith.constant dense<0.000000e+00> : vector<16xf32>
    %241 = vector.multi_reduction <add>, %237, %cst_63 [1] : vector<16x32xf32> to vector<16xf32>
    %242 = vector.shape_cast %241 : vector<16xf32> to vector<16x1xf32>
    %cst_64 = arith.constant 3.200000e+01 : f32
    %243 = vector.broadcast %cst_64 : f32 to vector<16x1xf32>
    %244 = arith.divf %242, %243 : vector<16x1xf32>
    %245 = vector.broadcast %244 : vector<16x1xf32> to vector<16x32xf32>
    %246 = arith.subf %237, %245 : vector<16x32xf32>
    %247 = arith.mulf %246, %246 : vector<16x32xf32>
    %cst_65 = arith.constant dense<0.000000e+00> : vector<16xf32>
    %248 = vector.multi_reduction <add>, %247, %cst_65 [1] : vector<16x32xf32> to vector<16xf32>
    %249 = vector.shape_cast %248 : vector<16xf32> to vector<16x1xf32>
    %cst_66 = arith.constant 3.200000e+01 : f32
    %250 = vector.broadcast %cst_66 : f32 to vector<16x1xf32>
    %251 = arith.divf %249, %250 : vector<16x1xf32>
    %252 = vector.broadcast %244 : vector<16x1xf32> to vector<16x32xf32>
    %253 = arith.subf %237, %252 : vector<16x32xf32>
    %cst_67 = arith.constant 9.99999974E-6 : f32
    %254 = vector.broadcast %cst_67 : f32 to vector<16x1xf32>
    %255 = arith.addf %251, %254 : vector<16x1xf32>
    %256 = math.rsqrt %255 : vector<16x1xf32>
    %257 = vector.broadcast %256 : vector<16x1xf32> to vector<16x32xf32>
    %258 = arith.mulf %253, %257 : vector<16x32xf32>
    %259 = vector.broadcast %239 : vector<1x32xf32> to vector<16x32xf32>
    %260 = arith.mulf %258, %259 : vector<16x32xf32>
    %261 = vector.broadcast %240 : vector<1x32xf32> to vector<16x32xf32>
    %262 = arith.addf %260, %261 : vector<16x32xf32>
    %c0_68 = arith.constant 0 : index
    %c0_69 = arith.constant 0 : index
    %263 = vector.load %arg3[%c0_68, %c0_69] : memref<16x8xf32, #tpu.memory_space<vmem>>, vector<16x8xf32>
    %264 = tpu.concatenate %262, %263 in 1 : vector<16x32xf32>, vector<16x8xf32> -> vector<16x40xf32>
    %c0_70 = arith.constant 0 : index
    %c384 = arith.constant 384 : index
    %265 = vector.load %arg6[%c0_70, %c384] : memref<1x1920xf32, #tpu.memory_space<vmem>>, vector<1x40xf32>
    %c0_71 = arith.constant 0 : index
    %c512 = arith.constant 512 : index
    %266 = vector.load %arg6[%c0_71, %c512] : memref<1x1920xf32, #tpu.memory_space<vmem>>, vector<1x40xf32>
    %cst_72 = arith.constant dense<0.000000e+00> : vector<16xf32>
    %267 = vector.multi_reduction <add>, %264, %cst_72 [1] : vector<16x40xf32> to vector<16xf32>
    %268 = vector.shape_cast %267 : vector<16xf32> to vector<16x1xf32>
    %cst_73 = arith.constant 4.000000e+01 : f32
    %269 = vector.broadcast %cst_73 : f32 to vector<16x1xf32>
    %270 = arith.divf %268, %269 : vector<16x1xf32>
    %271 = vector.broadcast %270 : vector<16x1xf32> to vector<16x40xf32>
    %272 = arith.subf %264, %271 : vector<16x40xf32>
    %273 = arith.mulf %272, %272 : vector<16x40xf32>
    %cst_74 = arith.constant dense<0.000000e+00> : vector<16xf32>
    %274 = vector.multi_reduction <add>, %273, %cst_74 [1] : vector<16x40xf32> to vector<16xf32>
    %275 = vector.shape_cast %274 : vector<16xf32> to vector<16x1xf32>
    %cst_75 = arith.constant 4.000000e+01 : f32
    %276 = vector.broadcast %cst_75 : f32 to vector<16x1xf32>
    %277 = arith.divf %275, %276 : vector<16x1xf32>
    %278 = vector.broadcast %270 : vector<16x1xf32> to vector<16x40xf32>
    %279 = arith.subf %264, %278 : vector<16x40xf32>
    %cst_76 = arith.constant 9.99999974E-6 : f32
    %280 = vector.broadcast %cst_76 : f32 to vector<16x1xf32>
    %281 = arith.addf %277, %280 : vector<16x1xf32>
    %282 = math.rsqrt %281 : vector<16x1xf32>
    %283 = vector.broadcast %282 : vector<16x1xf32> to vector<16x40xf32>
    %284 = arith.mulf %279, %283 : vector<16x40xf32>
    %285 = vector.broadcast %265 : vector<1x40xf32> to vector<16x40xf32>
    %286 = arith.mulf %284, %285 : vector<16x40xf32>
    %287 = vector.broadcast %266 : vector<1x40xf32> to vector<16x40xf32>
    %288 = arith.addf %286, %287 : vector<16x40xf32>
    %c0_77 = arith.constant 0 : index
    %c0_78 = arith.constant 0 : index
    %289 = vector.load %arg7[%c0_77, %c0_78] : memref<40x50xf32, #tpu.memory_space<vmem>>, vector<40x50xf32>
    %cst_79 = arith.constant dense<0.000000e+00> : vector<16x50xf32>
    %290 = tpu.matmul %288, %289, %cst_79 {dimension_numbers = #tpu.dot_dimension_numbers<[1], [0], [0], [1], [0, 0, 1, 1], [], []>} : vector<16x40xf32>, vector<40x50xf32>, vector<16x50xf32> -> vector<16x50xf32>
    %c0_80 = arith.constant 0 : index
    %c640 = arith.constant 640 : index
    %291 = vector.load %arg6[%c0_80, %c640] : memref<1x1920xf32, #tpu.memory_space<vmem>>, vector<1x50xf32>
    %292 = vector.broadcast %291 : vector<1x50xf32> to vector<16x50xf32>
    %293 = arith.addf %290, %292 : vector<16x50xf32>
    %c0_81 = arith.constant 0 : index
    %c768 = arith.constant 768 : index
    %294 = vector.load %arg6[%c0_81, %c768] : memref<1x1920xf32, #tpu.memory_space<vmem>>, vector<1x50xf32>
    %c0_82 = arith.constant 0 : index
    %c896 = arith.constant 896 : index
    %295 = vector.load %arg6[%c0_82, %c896] : memref<1x1920xf32, #tpu.memory_space<vmem>>, vector<1x50xf32>
    %cst_83 = arith.constant dense<0.000000e+00> : vector<16xf32>
    %296 = vector.multi_reduction <add>, %293, %cst_83 [1] : vector<16x50xf32> to vector<16xf32>
    %297 = vector.shape_cast %296 : vector<16xf32> to vector<16x1xf32>
    %cst_84 = arith.constant 5.000000e+01 : f32
    %298 = vector.broadcast %cst_84 : f32 to vector<16x1xf32>
    %299 = arith.divf %297, %298 : vector<16x1xf32>
    %300 = vector.broadcast %299 : vector<16x1xf32> to vector<16x50xf32>
    %301 = arith.subf %293, %300 : vector<16x50xf32>
    %302 = arith.mulf %301, %301 : vector<16x50xf32>
    %cst_85 = arith.constant dense<0.000000e+00> : vector<16xf32>
    %303 = vector.multi_reduction <add>, %302, %cst_85 [1] : vector<16x50xf32> to vector<16xf32>
    %304 = vector.shape_cast %303 : vector<16xf32> to vector<16x1xf32>
    %cst_86 = arith.constant 5.000000e+01 : f32
    %305 = vector.broadcast %cst_86 : f32 to vector<16x1xf32>
    %306 = arith.divf %304, %305 : vector<16x1xf32>
    %307 = vector.broadcast %299 : vector<16x1xf32> to vector<16x50xf32>
    %308 = arith.subf %293, %307 : vector<16x50xf32>
    %cst_87 = arith.constant 9.99999974E-6 : f32
    %309 = vector.broadcast %cst_87 : f32 to vector<16x1xf32>
    %310 = arith.addf %306, %309 : vector<16x1xf32>
    %311 = math.rsqrt %310 : vector<16x1xf32>
    %312 = vector.broadcast %311 : vector<16x1xf32> to vector<16x50xf32>
    %313 = arith.mulf %308, %312 : vector<16x50xf32>
    %314 = vector.broadcast %294 : vector<1x50xf32> to vector<16x50xf32>
    %315 = arith.mulf %313, %314 : vector<16x50xf32>
    %316 = vector.broadcast %295 : vector<1x50xf32> to vector<16x50xf32>
    %317 = arith.addf %315, %316 : vector<16x50xf32>
    %cst_88 = arith.constant 0.000000e+00 : f32
    %318 = vector.broadcast %cst_88 : f32 to vector<16x50xf32>
    %319 = arith.maximumf %317, %318 : vector<16x50xf32>
    %c0_89 = arith.constant 0 : index
    %c0_90 = arith.constant 0 : index
    %320 = vector.load %arg8[%c0_89, %c0_90] : memref<50x20xf32, #tpu.memory_space<vmem>>, vector<50x20xf32>
    %cst_91 = arith.constant dense<0.000000e+00> : vector<16x20xf32>
    %321 = tpu.matmul %319, %320, %cst_91 {dimension_numbers = #tpu.dot_dimension_numbers<[1], [0], [0], [1], [0, 0, 1, 1], [], []>} : vector<16x50xf32>, vector<50x20xf32>, vector<16x20xf32> -> vector<16x20xf32>
    %c0_92 = arith.constant 0 : index
    %c1024 = arith.constant 1024 : index
    %322 = vector.load %arg6[%c0_92, %c1024] : memref<1x1920xf32, #tpu.memory_space<vmem>>, vector<1x20xf32>
    %323 = vector.broadcast %322 : vector<1x20xf32> to vector<16x20xf32>
    %324 = arith.addf %321, %323 : vector<16x20xf32>
    %c0_93 = arith.constant 0 : index
    %c1152 = arith.constant 1152 : index
    %325 = vector.load %arg6[%c0_93, %c1152] : memref<1x1920xf32, #tpu.memory_space<vmem>>, vector<1x20xf32>
    %c0_94 = arith.constant 0 : index
    %c1280 = arith.constant 1280 : index
    %326 = vector.load %arg6[%c0_94, %c1280] : memref<1x1920xf32, #tpu.memory_space<vmem>>, vector<1x20xf32>
    %cst_95 = arith.constant dense<0.000000e+00> : vector<16xf32>
    %327 = vector.multi_reduction <add>, %324, %cst_95 [1] : vector<16x20xf32> to vector<16xf32>
    %328 = vector.shape_cast %327 : vector<16xf32> to vector<16x1xf32>
    %cst_96 = arith.constant 2.000000e+01 : f32
    %329 = vector.broadcast %cst_96 : f32 to vector<16x1xf32>
    %330 = arith.divf %328, %329 : vector<16x1xf32>
    %331 = vector.broadcast %330 : vector<16x1xf32> to vector<16x20xf32>
    %332 = arith.subf %324, %331 : vector<16x20xf32>
    %333 = arith.mulf %332, %332 : vector<16x20xf32>
    %cst_97 = arith.constant dense<0.000000e+00> : vector<16xf32>
    %334 = vector.multi_reduction <add>, %333, %cst_97 [1] : vector<16x20xf32> to vector<16xf32>
    %335 = vector.shape_cast %334 : vector<16xf32> to vector<16x1xf32>
    %cst_98 = arith.constant 2.000000e+01 : f32
    %336 = vector.broadcast %cst_98 : f32 to vector<16x1xf32>
    %337 = arith.divf %335, %336 : vector<16x1xf32>
    %338 = vector.broadcast %330 : vector<16x1xf32> to vector<16x20xf32>
    %339 = arith.subf %324, %338 : vector<16x20xf32>
    %cst_99 = arith.constant 9.99999974E-6 : f32
    %340 = vector.broadcast %cst_99 : f32 to vector<16x1xf32>
    %341 = arith.addf %337, %340 : vector<16x1xf32>
    %342 = math.rsqrt %341 : vector<16x1xf32>
    %343 = vector.broadcast %342 : vector<16x1xf32> to vector<16x20xf32>
    %344 = arith.mulf %339, %343 : vector<16x20xf32>
    %345 = vector.broadcast %325 : vector<1x20xf32> to vector<16x20xf32>
    %346 = arith.mulf %344, %345 : vector<16x20xf32>
    %347 = vector.broadcast %326 : vector<1x20xf32> to vector<16x20xf32>
    %348 = arith.addf %346, %347 : vector<16x20xf32>
    %cst_100 = arith.constant 0.000000e+00 : f32
    %349 = vector.broadcast %cst_100 : f32 to vector<16x20xf32>
    %350 = arith.maximumf %348, %349 : vector<16x20xf32>
    %c0_101 = arith.constant 0 : index
    %c0_102 = arith.constant 0 : index
    %351 = vector.load %arg9[%c0_101, %c0_102] : memref<20x10xf32, #tpu.memory_space<vmem>>, vector<20x10xf32>
    %cst_103 = arith.constant dense<0.000000e+00> : vector<16x10xf32>
    %352 = tpu.matmul %350, %351, %cst_103 {dimension_numbers = #tpu.dot_dimension_numbers<[1], [0], [0], [1], [0, 0, 1, 1], [], []>} : vector<16x20xf32>, vector<20x10xf32>, vector<16x10xf32> -> vector<16x10xf32>
    %c0_104 = arith.constant 0 : index
    %c1408 = arith.constant 1408 : index
    %353 = vector.load %arg6[%c0_104, %c1408] : memref<1x1920xf32, #tpu.memory_space<vmem>>, vector<1x10xf32>
    %354 = vector.broadcast %353 : vector<1x10xf32> to vector<16x10xf32>
    %355 = arith.addf %352, %354 : vector<16x10xf32>
    %c0_105 = arith.constant 0 : index
    %c1536 = arith.constant 1536 : index
    %356 = vector.load %arg6[%c0_105, %c1536] : memref<1x1920xf32, #tpu.memory_space<vmem>>, vector<1x10xf32>
    %c0_106 = arith.constant 0 : index
    %c1664 = arith.constant 1664 : index
    %357 = vector.load %arg6[%c0_106, %c1664] : memref<1x1920xf32, #tpu.memory_space<vmem>>, vector<1x10xf32>
    %cst_107 = arith.constant dense<0.000000e+00> : vector<16xf32>
    %358 = vector.multi_reduction <add>, %355, %cst_107 [1] : vector<16x10xf32> to vector<16xf32>
    %359 = vector.shape_cast %358 : vector<16xf32> to vector<16x1xf32>
    %cst_108 = arith.constant 1.000000e+01 : f32
    %360 = vector.broadcast %cst_108 : f32 to vector<16x1xf32>
    %361 = arith.divf %359, %360 : vector<16x1xf32>
    %362 = vector.broadcast %361 : vector<16x1xf32> to vector<16x10xf32>
    %363 = arith.subf %355, %362 : vector<16x10xf32>
    %364 = arith.mulf %363, %363 : vector<16x10xf32>
    %cst_109 = arith.constant dense<0.000000e+00> : vector<16xf32>
    %365 = vector.multi_reduction <add>, %364, %cst_109 [1] : vector<16x10xf32> to vector<16xf32>
    %366 = vector.shape_cast %365 : vector<16xf32> to vector<16x1xf32>
    %cst_110 = arith.constant 1.000000e+01 : f32
    %367 = vector.broadcast %cst_110 : f32 to vector<16x1xf32>
    %368 = arith.divf %366, %367 : vector<16x1xf32>
    %369 = vector.broadcast %361 : vector<16x1xf32> to vector<16x10xf32>
    %370 = arith.subf %355, %369 : vector<16x10xf32>
    %cst_111 = arith.constant 9.99999974E-6 : f32
    %371 = vector.broadcast %cst_111 : f32 to vector<16x1xf32>
    %372 = arith.addf %368, %371 : vector<16x1xf32>
    %373 = math.rsqrt %372 : vector<16x1xf32>
    %374 = vector.broadcast %373 : vector<16x1xf32> to vector<16x10xf32>
    %375 = arith.mulf %370, %374 : vector<16x10xf32>
    %376 = vector.broadcast %356 : vector<1x10xf32> to vector<16x10xf32>
    %377 = arith.mulf %375, %376 : vector<16x10xf32>
    %378 = vector.broadcast %357 : vector<1x10xf32> to vector<16x10xf32>
    %379 = arith.addf %377, %378 : vector<16x10xf32>
    %cst_112 = arith.constant 0.000000e+00 : f32
    %380 = vector.broadcast %cst_112 : f32 to vector<16x10xf32>
    %381 = arith.maximumf %379, %380 : vector<16x10xf32>
    %c0_113 = arith.constant 0 : index
    %c0_114 = arith.constant 0 : index
    %382 = vector.load %arg10[%c0_113, %c0_114] : memref<10x128xf32, #tpu.memory_space<vmem>>, vector<10x128xf32>
    %cst_115 = arith.constant dense<0.000000e+00> : vector<16x128xf32>
    %383 = tpu.matmul %381, %382, %cst_115 {dimension_numbers = #tpu.dot_dimension_numbers<[1], [0], [0], [1], [0, 0, 1, 1], [], []>} : vector<16x10xf32>, vector<10x128xf32>, vector<16x128xf32> -> vector<16x128xf32>
    %c0_116 = arith.constant 0 : index
    %c1792 = arith.constant 1792 : index
    %384 = vector.load %arg6[%c0_116, %c1792] : memref<1x1920xf32, #tpu.memory_space<vmem>>, vector<1x128xf32>
    %385 = vector.broadcast %384 : vector<1x128xf32> to vector<16x128xf32>
    %386 = arith.addf %383, %385 : vector<16x128xf32>
    %c0_117 = arith.constant 0 : index
    %c0_118 = arith.constant 0 : index
    %387 = vector.load %arg11[%c0_117, %c0_118] : memref<16x128xf32, #tpu.memory_space<vmem>>, vector<16x128xf32>
    tpu.vector_store %arg11[%c0_117, %c0_118], %386 {strides = array<i32>} : memref<16x128xf32, #tpu.memory_space<vmem>>, vector<16x128xf32>,
    return
  }
  func.func @transform_0(%arg0: i32) -> (i32, i32, i32) {
    %c0_i32 = arith.constant 0 : i32
    %c0_i32_0 = arith.constant 0 : i32
    %c0_i32_1 = arith.constant 0 : i32
    return %c0_i32, %arg0, %c0_i32_0 : i32, i32, i32
  }
  func.func @transform_1(%arg0: i32) -> (i32, i32) {
    %c0_i32 = arith.constant 0 : i32
    %c0_i32_0 = arith.constant 0 : i32
    return %arg0, %c0_i32 : i32, i32
  }
  func.func @transform_2(%arg0: i32) -> (i32, i32) {
    %c0_i32 = arith.constant 0 : i32
    %c0_i32_0 = arith.constant 0 : i32
    return %arg0, %c0_i32 : i32, i32
  }
  func.func @transform_3(%arg0: i32) -> (i32, i32) {
    %c0_i32 = arith.constant 0 : i32
    %c0_i32_0 = arith.constant 0 : i32
    %c0_i32_1 = arith.constant 0 : i32
    return %c0_i32, %c0_i32_0 : i32, i32
  }
  func.func @transform_4(%arg0: i32) -> (i32, i32) {
    %c0_i32 = arith.constant 0 : i32
    %c0_i32_0 = arith.constant 0 : i32
    %c0_i32_1 = arith.constant 0 : i32
    return %c0_i32, %c0_i32_0 : i32, i32
  }
  func.func @transform_5(%arg0: i32) -> (i32, i32) {
    %c0_i32 = arith.constant 0 : i32
    %c0_i32_0 = arith.constant 0 : i32
    %c0_i32_1 = arith.constant 0 : i32
    return %c0_i32, %c0_i32_0 : i32, i32
  }
  func.func @transform_6(%arg0: i32) -> (i32, i32) {
    %c0_i32 = arith.constant 0 : i32
    %c0_i32_0 = arith.constant 0 : i32
    %c0_i32_1 = arith.constant 0 : i32
    return %c0_i32, %c0_i32_0 : i32, i32
  }
  func.func @transform_7(%arg0: i32) -> (i32, i32) {
    %c0_i32 = arith.constant 0 : i32
    %c0_i32_0 = arith.constant 0 : i32
    %c0_i32_1 = arith.constant 0 : i32
    return %c0_i32, %c0_i32_0 : i32, i32
  }
  func.func @transform_8(%arg0: i32) -> (i32, i32) {
    %c0_i32 = arith.constant 0 : i32
    %c0_i32_0 = arith.constant 0 : i32
    %c0_i32_1 = arith.constant 0 : i32
    return %c0_i32, %c0_i32_0 : i32, i32
  }
  func.func @transform_9(%arg0: i32) -> (i32, i32) {
    %c0_i32 = arith.constant 0 : i32
    %c0_i32_0 = arith.constant 0 : i32
    %c0_i32_1 = arith.constant 0 : i32
    return %c0_i32, %c0_i32_0 : i32, i32
  }
  func.func @transform_10(%arg0: i32) -> (i32, i32) {
    %c0_i32 = arith.constant 0 : i32
    %c0_i32_0 = arith.constant 0 : i32
    return %arg0, %c0_i32 : i32, i32
  }
}

</mosaic_0001>

<llo_original>
// kernel: tpu_custom_call.1
$region0: #{tpu_custom_call.1}
  #allocation0 [shape = 'u32[]', space=smem, size = 0x4, offset = 0x4, fixed_abs, tag = 'smem constant byte address 0x4 - core index']
  #allocation1 [shape = 'u32[144,128]{1,0:T(1,128)}', space=vmem, size = 0x12000, scoped, tag = 'internal scratch']
  #allocation2 [shape = 'bf16[8,16,128]{2,1,0:T(8,128)(2,1)}', space=vmem, size = 0x8000, scoped, tag = 'scratch operand']
  %s0 = inlined_call_operand.vmem [shape: bf16[8,16,6], index: 0, kind: input, shape index: {}]
  %s1 = inlined_call_operand.vmem [shape: s32[16,1], index: 1, kind: input, shape index: {}]
  %s2 = inlined_call_operand.vmem [shape: f32[16,8], index: 2, kind: input, shape index: {}]
  %s3 = inlined_call_operand.vmem [shape: bf16[6,128], index: 3, kind: input, shape index: {}]
  %s4 = inlined_call_operand.vmem [shape: bf16[32,128], index: 4, kind: input, shape index: {}]
  %s5 = inlined_call_operand.vmem [shape: f32[1,1920], index: 5, kind: input, shape index: {}]
  %s6 = inlined_call_operand.vmem [shape: f32[40,50], index: 6, kind: input, shape index: {}]
  %s7 = inlined_call_operand.vmem [shape: f32[50,20], index: 7, kind: input, shape index: {}]
  %s8 = inlined_call_operand.vmem [shape: f32[20,10], index: 8, kind: input, shape index: {}]
  %s9 = inlined_call_operand.vmem [shape: f32[10,128], index: 9, kind: input, shape index: {}]
  %s10 = inlined_call_operand.hbm [shape: f32[16,128], index: 10, kind: output, shape index: {}]
  %s11 = sld [smem:[#allocation0]]
  $region50: #{tpu_custom_call.1} parent=0
    _
  %s13 = ssub.s32 1, %s11
  %s14 = scalar_select 0, %s13, %s11
  $region1: #{tpu_custom_call.1} parent=0
    #allocation3 [shape = 'u8[8192]{0}', space=vmem, size = 0x2000, scoped, tag = 'output window, operand 0, single buffered']
    #allocation4 [shape = 's32[1]{0}', space=sflag, size = 0x4, scoped, tag = 'scoped memory for tpu_custom_call.1']
    %15 = vsyncpa [#allocation4], 0
    // Predicated region
    $region2: #{tpu_custom_call.1} parent=1 // pred_check
      _
    $region3: #{tpu_custom_call.1} parent=1 // pred_check_branch
      %17 = sbr.rel (0) target = $region5
    $region4: #{tpu_custom_call.1} parent=1 // pred_region
      _
    $region5: #{tpu_custom_call.1} parent=1 // pred_fallthru
      _
    // Predicated region
    $region6: #{tpu_custom_call.1} parent=1 // pred_check
      _
    $region7: #{tpu_custom_call.1} parent=1 // pred_check_branch
      %19 = sbr.rel (0) target = $region9
    $region8: #{tpu_custom_call.1} parent=1 // pred_region
      _
    $region9: #{tpu_custom_call.1} parent=1 // pred_fallthru
      _
    // Predicated region
    $region10: #{tpu_custom_call.1} parent=1 // pred_check
      _
    $region11: #{tpu_custom_call.1} parent=1 // pred_check_branch
      %21 = sbr.rel (0) target = $region13
    $region12: #{tpu_custom_call.1} parent=1 // pred_region
      _
    $region13: #{tpu_custom_call.1} parent=1 // pred_fallthru
      _
    // Predicated region
    $region14: #{tpu_custom_call.1} parent=1 // pred_check
      _
    $region15: #{tpu_custom_call.1} parent=1 // pred_check_branch
      %23 = sbr.rel (0) target = $region17
    $region16: #{tpu_custom_call.1} parent=1 // pred_region
      _
    $region17: #{tpu_custom_call.1} parent=1 // pred_fallthru
      _
    // Predicated region
    $region18: #{tpu_custom_call.1} parent=1 // pred_check
      _
    $region19: #{tpu_custom_call.1} parent=1 // pred_check_branch
      %25 = sbr.rel (0) target = $region21
    $region20: #{tpu_custom_call.1} parent=1 // pred_region
      _
    $region21: #{tpu_custom_call.1} parent=1 // pred_fallthru
      _
    // Predicated region
    $region22: #{tpu_custom_call.1} parent=1 // pred_check
      _
    $region23: #{tpu_custom_call.1} parent=1 // pred_check_branch
      %27 = sbr.rel (0) target = $region25
    $region24: #{tpu_custom_call.1} parent=1 // pred_region
      _
    $region25: #{tpu_custom_call.1} parent=1 // pred_fallthru
      _
    // Predicated region
    $region26: #{tpu_custom_call.1} parent=1 // pred_check
      _
    $region27: #{tpu_custom_call.1} parent=1 // pred_check_branch
      %29 = sbr.rel (0) target = $region29
    $region28: #{tpu_custom_call.1} parent=1 // pred_region
      _
    $region29: #{tpu_custom_call.1} parent=1 // pred_fallthru
      _
    // Predicated region
    $region30: #{tpu_custom_call.1} parent=1 // pred_check
      _
    $region31: #{tpu_custom_call.1} parent=1 // pred_check_branch
      %31 = sbr.rel (0) target = $region33
    $region32: #{tpu_custom_call.1} parent=1 // pred_region
      _
    $region33: #{tpu_custom_call.1} parent=1 // pred_fallthru
      _
    // Predicated region
    $region34: #{tpu_custom_call.1} parent=1 // pred_check
      _
    $region35: #{tpu_custom_call.1} parent=1 // pred_check_branch
      %33 = sbr.rel (0) target = $region37
    $region36: #{tpu_custom_call.1} parent=1 // pred_region
      _
    $region37: #{tpu_custom_call.1} parent=1 // pred_fallthru
      _
    // Predicated region
    $region38: #{tpu_custom_call.1} parent=1 // pred_check
      _
    $region39: #{tpu_custom_call.1} parent=1 // pred_check_branch
      %35 = sbr.rel (0) target = $region41
    $region40: #{tpu_custom_call.1} parent=1 // pred_region
      _
    $region41: #{tpu_custom_call.1} parent=1 // pred_fallthru
      _
    %v37 = vld [vmem:[%s0] sm:$0xf]
    %v38 = vld [vmem:[%s0 + $0x4] sm:$0xf]
    %v39 = vld [vmem:[%s0 + $0x8] sm:$0xf]
    %v40 = vld [vmem:[%s0 + $0xc] sm:$0xf]
    %v41 = vld [vmem:[%s0 + $0x10] sm:$0xf]
    %v42 = vld [vmem:[%s0 + $0x14] sm:$0xf]
    %v43 = vld [vmem:[%s0 + $0x18] sm:$0xf]
    %v44 = vld [vmem:[%s0 + $0x1c] sm:$0xf]
    %v45 = vld [vmem:[%s0 + $0x20] sm:$0xf]
    %v46 = vld [vmem:[%s0 + $0x24] sm:$0xf]
    %v47 = vld [vmem:[%s0 + $0x28] sm:$0xf]
    %v48 = vld [vmem:[%s0 + $0x2c] sm:$0xf]
    %v49 = vld [vmem:[%s0 + $0x30] sm:$0xf]
    %v50 = vld [vmem:[%s0 + $0x34] sm:$0xf]
    %v51 = vld [vmem:[%s0 + $0x38] sm:$0xf]
    %v52 = vld [vmem:[%s0 + $0x3c] sm:$0xf]
    %v53 = vld [vmem:[%s3] sm:$0x7]
    %v54 = vld [vmem:[%s5] sm:$0x1]
    %v56 = vlaneseq
    %v57 = vshrl.u32 %v56, 7
    %v58 = vsub.s32 0, %v57
    %v59 = vrot.slane %v54, %v58
    %v77 = vunpack.c.l.b16 %v37
    %v78 = vunpack.c.l.b16 %v38
    %v79 = vunpack.c.l.b16 %v39
    %v80 = vunpack.c.l.b16 %v40
    %v81 = vunpack.c.l.b16 %v41
    %v82 = vunpack.c.l.b16 %v42
    %v83 = vunpack.c.l.b16 %v43
    %v84 = vunpack.c.l.b16 %v44
    %v85 = vunpack.c.l.b16 %v45
    %v86 = vunpack.c.l.b16 %v46
    %v87 = vunpack.c.l.b16 %v47
    %v88 = vunpack.c.l.b16 %v48
    %v89 = vunpack.c.l.b16 %v49
    %v90 = vunpack.c.l.b16 %v50
    %v91 = vunpack.c.l.b16 %v51
    %v92 = vunpack.c.l.b16 %v52
    %v93 = vpack.c.b16 %v78, %v77
    %v94 = vpack.c.b16 %v80, %v79
    %v95 = vpack.c.b16 %v82, %v81
    %v96 = vpack.c.b16 %v84, %v83
    %v97 = vpack.c.b16 %v86, %v85
    %v98 = vpack.c.b16 %v88, %v87
    %v99 = vpack.c.b16 %v90, %v89
    %v100 = vpack.c.b16 %v92, %v91
    %vm101 = vcmask 48128
    %v103 = vsel %vm101, %v93, 0
    %v106 = vsel %vm101, %v94, 0
    %v109 = vsel %vm101, %v95, 0
    %v112 = vsel %vm101, %v96, 0
    %v115 = vsel %vm101, %v97, 0
    %v118 = vsel %vm101, %v98, 0
    %v121 = vsel %vm101, %v99, 0
    %v124 = vsel %vm101, %v100, 0
    %vm126 = vcmask 1042432
    %v128 = vsel %vm126, %v53, 0
    %130 = vmatprep.subr.bf16.mxu0 0
    %131 = vmatpush1.bf16.msra.mxu0 0
    %132 = vmatprep.subr.bf16.mxu0 0
    %133 = vmatpush1.bf16.msra.mxu0 0
    %134 = vmatprep.subr.bf16.mxu0 0
    %135 = vmatpush1.bf16.msra.mxu0 0
    %136 = vmatprep.subr.bf16.mxu0 0
    %137 = vmatpush1.bf16.msra.mxu0 0
    %138 = vmatprep.subr.bf16.mxu0 0
    %139 = vmatpush1.bf16.msra.mxu0 0
    %140 = vmatprep.subr.bf16.mxu0 0
    %141 = vmatpush1.bf16.msra.mxu0 0
    %142 = vmatprep.subr.bf16.mxu0 0
    %143 = vmatpush1.bf16.msra.mxu0 0
    %144 = vmatprep.subr.bf16.mxu0 0
    %145 = vmatpush1.bf16.msra.mxu0 %v128
    %146 = vmatprep.subr.bf16.mxu0 0
    %147 = vmatpush2.bf16.msra.mxu0 0
    %148 = vmatprep.subr.bf16.mxu0 0
    %149 = vmatpush2.bf16.msra.mxu0 0
    %150 = vmatprep.subr.bf16.mxu0 0
    %151 = vmatpush2.bf16.msra.mxu0 0
    %152 = vmatprep.subr.bf16.mxu0 0
    %153 = vmatpush2.bf16.msra.mxu0 0
    %154 = vmatprep.subr.bf16.mxu0 0
    %155 = vmatpush2.bf16.msra.mxu0 0
    %156 = vmatprep.subr.bf16.mxu0 0
    %157 = vmatpush2.bf16.msra.mxu0 0
    %158 = vmatprep.subr.bf16.mxu0 0
    %159 = vmatpush2.bf16.msra.mxu0 0
    %160 = vmatprep.subr.bf16.mxu0 0
    %161 = vmatpush2.bf16.msra.mxu0 0
    %162 = vmatprep.mubr.bf16.mxu0 0
    %163 = vmatmul.mubr.bf16.gmra.mxu0 %v103
    %v164 = vpop.f32.mrf.mxu0
    %v165 = vadd.f32 %v59, %v164
    %v166 = vpop.f32.mrf.mxu0
    %v167 = vpop.f32.mrf.mxu0
    %v168 = vadd.f32 %v59, %v167
    %v169 = vpop.f32.mrf.mxu0
    %170 = vmatprep.mubr.bf16.mxu0 0
    %171 = vmatmul.mubr.bf16.gmra.mxu0 %v106
    %v172 = vpop.f32.mrf.mxu0
    %v173 = vadd.f32 %v59, %v172
    %v174 = vpop.f32.mrf.mxu0
    %v175 = vpop.f32.mrf.mxu0
    %v176 = vadd.f32 %v59, %v175
    %v177 = vpop.f32.mrf.mxu0
    %178 = vmatprep.mubr.bf16.mxu0 0
    %179 = vmatmul.mubr.bf16.gmra.mxu0 %v109
    %v180 = vpop.f32.mrf.mxu0
    %v181 = vadd.f32 %v59, %v180
    %v182 = vpop.f32.mrf.mxu0
    %v183 = vpop.f32.mrf.mxu0
    %v184 = vadd.f32 %v59, %v183
    %v185 = vpop.f32.mrf.mxu0
    %186 = vmatprep.mubr.bf16.mxu0 0
    %187 = vmatmul.mubr.bf16.gmra.mxu0 %v112
    %v188 = vpop.f32.mrf.mxu0
    %v189 = vadd.f32 %v59, %v188
    %v190 = vpop.f32.mrf.mxu0
    %v191 = vpop.f32.mrf.mxu0
    %v192 = vadd.f32 %v59, %v191
    %v193 = vpop.f32.mrf.mxu0
    %194 = vmatprep.mubr.bf16.mxu0 0
    %195 = vmatmul.mubr.bf16.gmra.mxu0 %v115
    %v196 = vpop.f32.mrf.mxu0
    %v197 = vadd.f32 %v59, %v196
    %v198 = vpop.f32.mrf.mxu0
    %v199 = vpop.f32.mrf.mxu0
    %v200 = vadd.f32 %v59, %v199
    %v201 = vpop.f32.mrf.mxu0
    %202 = vmatprep.mubr.bf16.mxu0 0
    %203 = vmatmul.mubr.bf16.gmra.mxu0 %v118
    %v204 = vpop.f32.mrf.mxu0
    %v205 = vadd.f32 %v59, %v204
    %v206 = vpop.f32.mrf.mxu0
    %v207 = vpop.f32.mrf.mxu0
    %v208 = vadd.f32 %v59, %v207
    %v209 = vpop.f32.mrf.mxu0
    %210 = vmatprep.mubr.bf16.mxu0 0
    %211 = vmatmul.mubr.bf16.gmra.mxu0 %v121
    %v212 = vpop.f32.mrf.mxu0
    %v213 = vadd.f32 %v59, %v212
    %v214 = vpop.f32.mrf.mxu0
    %v215 = vpop.f32.mrf.mxu0
    %v216 = vadd.f32 %v59, %v215
    %v217 = vpop.f32.mrf.mxu0
    %218 = vmatprep.mubr.bf16.mxu0 0
    %219 = vmatmul.mubr.bf16.gmra.mxu0 %v124
    %v220 = vpop.f32.mrf.mxu0
    %v221 = vadd.f32 %v59, %v220
    %v222 = vpop.f32.mrf.mxu0
    %v223 = vpop.f32.mrf.mxu0
    %v224 = vadd.f32 %v59, %v223
    %v225 = vpop.f32.mrf.mxu0
    %226 = vdwg.mxu0
    %v227 = vpack.c.bf16 %v168, %v165
    %v228 = vpack.c.bf16 %v176, %v173
    %v229 = vpack.c.bf16 %v184, %v181
    %v230 = vpack.c.bf16 %v192, %v189
    %v231 = vpack.c.bf16 %v200, %v197
    %v232 = vpack.c.bf16 %v208, %v205
    %v233 = vpack.c.bf16 %v216, %v213
    %v234 = vpack.c.bf16 %v224, %v221
    %v243 = vunpack.c.l.b16 %v227
    %v244 = vunpack.c.h.b16 %v227
    %v245 = vunpack.c.l.b16 %v228
    %v246 = vunpack.c.h.b16 %v228
    %v247 = vunpack.c.l.b16 %v229
    %v248 = vunpack.c.h.b16 %v229
    %v249 = vunpack.c.l.b16 %v230
    %v250 = vunpack.c.h.b16 %v230
    %v251 = vunpack.c.l.b16 %v231
    %v252 = vunpack.c.h.b16 %v231
    %v253 = vunpack.c.l.b16 %v232
    %v254 = vunpack.c.h.b16 %v232
    %v255 = vunpack.c.l.b16 %v233
    %v256 = vunpack.c.h.b16 %v233
    %v257 = vunpack.c.l.b16 %v234
    %v258 = vunpack.c.h.b16 %v234
    %v259 = vpack.c.b16 %v243, %v243
    %v260 = vpack.c.b16 %v244, %v244
    %v261 = vpack.c.b16 %v245, %v245
    %v262 = vpack.c.b16 %v246, %v246
    %v263 = vpack.c.b16 %v247, %v247
    %v264 = vpack.c.b16 %v248, %v248
    %v265 = vpack.c.b16 %v249, %v249
    %v266 = vpack.c.b16 %v250, %v250
    %v267 = vpack.c.b16 %v251, %v251
    %v268 = vpack.c.b16 %v252, %v252
    %v269 = vpack.c.b16 %v253, %v253
    %v270 = vpack.c.b16 %v254, %v254
    %v271 = vpack.c.b16 %v255, %v255
    %v272 = vpack.c.b16 %v256, %v256
    %v273 = vpack.c.b16 %v257, %v257
    %v274 = vpack.c.b16 %v258, %v258
    %291 = vst [vmem:[#allocation2] sm:$0xf] %v259
    %292 = vst [vmem:[#allocation2 + $0x4] sm:$0xf] %v260
    %293 = vst [vmem:[#allocation2 + $0x8] sm:$0xf] %v261
    %294 = vst [vmem:[#allocation2 + $0xc] sm:$0xf] %v262
    %295 = vst [vmem:[#allocation2 + $0x10] sm:$0xf] %v263
    %296 = vst [vmem:[#allocation2 + $0x14] sm:$0xf] %v264
    %297 = vst [vmem:[#allocation2 + $0x18] sm:$0xf] %v265
    %298 = vst [vmem:[#allocation2 + $0x1c] sm:$0xf] %v266
    %299 = vst [vmem:[#allocation2 + $0x20] sm:$0xf] %v267
    %300 = vst [vmem:[#allocation2 + $0x24] sm:$0xf] %v268
    %301 = vst [vmem:[#allocation2 + $0x28] sm:$0xf] %v269
    %302 = vst [vmem:[#allocation2 + $0x2c] sm:$0xf] %v270
    %303 = vst [vmem:[#allocation2 + $0x30] sm:$0xf] %v271
    %304 = vst [vmem:[#allocation2 + $0x34] sm:$0xf] %v272
    %305 = vst [vmem:[#allocation2 + $0x38] sm:$0xf] %v273
    %306 = vst [vmem:[#allocation2 + $0x3c] sm:$0xf] %v274
    %v307 = vld [vmem:[%s1] sm:$0xff]
    %v308 = vld [vmem:[%s1 + $0x8] sm:$0xff]
    %309 = vset.pattern.permute.xlu0 0
    %310 = vperm.xlu0 %309, %v307
    %v311 = vpop.permute.xlu0 %310
    %312 = vset.pattern.permute.xlu0 0
    %313 = vperm.xlu0 %312, %v308
    %v314 = vpop.permute.xlu0 %313
    %v315 = vld [vmem:[#allocation2] sm:$0xf]
    %v316 = vld [vmem:[#allocation2 + $0x4] sm:$0xf]
    %v317 = vld [vmem:[%s4] sm:$0xf]
    %v318 = vld [vmem:[%s4 + $0x4] sm:$0xf]
    %v319 = vld [vmem:[%s4 + $0x8] sm:$0xf]
    %v320 = vld [vmem:[%s4 + $0xc] sm:$0xf]
    %v325 = vunpack.c.l.b16 %v317
    %v326 = vunpack.c.l.b16 %v318
    %v327 = vunpack.c.l.b16 %v319
    %v328 = vunpack.c.l.b16 %v320
    %v329 = vpack.c.b16 %v326, %v325
    %v330 = vpack.c.b16 %v328, %v327
    %vm333 = vcmask 261120
    %v335 = vsel %vm333, 0, 0
    %337 = vmatprep.subr.bf16.mxu0 0
    %338 = vmatpush1.bf16.msra.mxu0 0
    %339 = vmatprep.subr.bf16.mxu0 0
    %340 = vmatpush1.bf16.msra.mxu0 0
    %341 = vmatprep.subr.bf16.mxu0 0
    %342 = vmatpush1.bf16.msra.mxu0 0
    %343 = vmatprep.subr.bf16.mxu0 0
    %344 = vmatpush1.bf16.msra.mxu0 0
    %345 = vmatprep.subr.bf16.mxu0 0
    %346 = vmatpush1.bf16.msra.mxu0 0
    %347 = vmatprep.subr.bf16.mxu0 0
    %348 = vmatpush1.bf16.msra.mxu0 0
    %349 = vmatprep.subr.bf16.mxu0 0
    %350 = vmatpush1.bf16.msra.mxu0 %v330
    %351 = vmatprep.subr.bf16.mxu0 0
    %352 = vmatpush1.bf16.msra.mxu0 %v329
    %353 = vmatprep.subr.bf16.mxu0 0
    %354 = vmatpush2.bf16.msra.mxu0 0
    %355 = vmatprep.subr.bf16.mxu0 0
    %356 = vmatpush2.bf16.msra.mxu0 0
    %357 = vmatprep.subr.bf16.mxu0 0
    %358 = vmatpush2.bf16.msra.mxu0 0
    %359 = vmatprep.subr.bf16.mxu0 0
    %360 = vmatpush2.bf16.msra.mxu0 0
    %361 = vmatprep.subr.bf16.mxu0 0
    %362 = vmatpush2.bf16.msra.mxu0 0
    %363 = vmatprep.subr.bf16.mxu0 0
    %364 = vmatpush2.bf16.msra.mxu0 0
    %365 = vmatprep.subr.bf16.mxu0 0
    %366 = vmatpush2.bf16.msra.mxu0 0
    %367 = vmatprep.subr.bf16.mxu0 0
    %368 = vmatpush2.bf16.msra.mxu0 0
    %369 = vmatprep.mubr.bf16.mxu0 0
    %370 = vmatmul.mubr.bf16.gmra.mxu0 %v335
    %v371 = vpop.f32.mrf.mxu0
    %v372 = vadd.f32 0.0, %v371
    %v373 = vpop.f32.mrf.mxu0
    %v374 = vpop.f32.mrf.mxu0
    %v375 = vadd.f32 0.0, %v374
    %v376 = vpop.f32.mrf.mxu0
    %377 = vdwg.mxu0
    %v378 = vunpack.c.l.bf16 %v315
    %v379 = vunpack.c.l.bf16 %v316
    %v380 = vadd.f32 %v378, %v372
    %v381 = vadd.f32 %v379, %v375
    %v382 = vxor.u32 %v380, 2147483648
    %v383 = vxor.u32 %v381, 2147483648
    %v384 = vmul.f32 %v382, 1.442695
    %v385 = vpow.pop %v384
    %v386 = vmul.f32 %v383, 1.442695
    %v387 = vpow.pop %v386
    %v388 = vadd.f32 %v385, 1.0
    %v389 = vadd.f32 %v387, 1.0
    %v390 = vrcp.pop %v388
    %v391 = vmul.f32 1.0, %v390
    %v392 = vrcp.pop %v389
    %v393 = vmul.f32 1.0, %v392
    %v394 = vtanh.pop %v380
    %v395 = vtanh.pop %v381
    %v396 = vmul.f32 %v391, 0.0
    %v397 = vmul.f32 %v393, 0.0
    %400 = vrot.lane.b32.xlu0 %v394, 32
    %v401 = vpop.permute.xlu0 %400
    %402 = vrot.lane.b32.xlu0 %v395, 32
    %v403 = vpop.permute.xlu0 %402
    %v406 = vmul.f32 %v391, %v401
    %v407 = vmul.f32 %v393, %v403
    %410 = vrot.lane.b32.xlu0 %v406, 32
    %v411 = vpop.permute.xlu0 %410
    %412 = vrot.lane.b32.xlu0 %v407, 32
    %v413 = vpop.permute.xlu0 %412
    %v416 = vadd.f32 %v396, %v411
    %v417 = vadd.f32 %v397, %v413
    %v418 = vtanh.pop %v416
    %v419 = vtanh.pop %v417
    %422 = vrot.lane.b32.xlu0 %v418, 32
    %v423 = vpop.permute.xlu0 %422
    %424 = vrot.lane.b32.xlu0 %v419, 32
    %v425 = vpop.permute.xlu0 %424
    %v428 = vmul.f32 %v391, %v423
    %v429 = vmul.f32 %v393, %v425
    %vm430 = vcmp.gt.s32.totalorder %v311, 0
    %vm431 = vcmp.gt.s32.totalorder %v314, 0
    %v432 = vsel %vm430, %v428, 0.0
    %v433 = vsel %vm431, %v429, 0.0
    %v434 = vsel %vm430, %v416, 0.0
    %v435 = vsel %vm431, %v417, 0.0
    %s436 = scalar_lea.vmem [#allocation2], 8
    %v437 = vld [vmem:[%s436] sm:$0xf]
    %v438 = vld [vmem:[%s436 + $0x4] sm:$0xf]
    %v439 = vpack.c.bf16 %v433, %v432
    %441 = vrot.lane.b32.xlu0 %v439, 64
    %v442 = vpop.permute.xlu0 %441
    %v444 = vsel %vm333, %v442, 0
    %446 = vmatprep.subr.bf16.mxu0 0
    %447 = vmatpush1.bf16.msra.mxu0 0
    %448 = vmatprep.subr.bf16.mxu0 0
    %449 = vmatpush1.bf16.msra.mxu0 0
    %450 = vmatprep.subr.bf16.mxu0 0
    %451 = vmatpush1.bf16.msra.mxu0 0
    %452 = vmatprep.subr.bf16.mxu0 0
    %453 = vmatpush1.bf16.msra.mxu0 0
    %454 = vmatprep.subr.bf16.mxu0 0
    %455 = vmatpush1.bf16.msra.mxu0 0
    %456 = vmatprep.subr.bf16.mxu0 0
    %457 = vmatpush1.bf16.msra.mxu0 0
    %458 = vmatprep.subr.bf16.mxu0 0
    %459 = vmatpush1.bf16.msra.mxu0 %v330
    %460 = vmatprep.subr.bf16.mxu0 0
    %461 = vmatpush1.bf16.msra.mxu0 %v329
    %462 = vmatprep.subr.bf16.mxu0 0
    %463 = vmatpush2.bf16.msra.mxu0 0
    %464 = vmatprep.subr.bf16.mxu0 0
    %465 = vmatpush2.bf16.msra.mxu0 0
    %466 = vmatprep.subr.bf16.mxu0 0
    %467 = vmatpush2.bf16.msra.mxu0 0
    %468 = vmatprep.subr.bf16.mxu0 0
    %469 = vmatpush2.bf16.msra.mxu0 0
    %470 = vmatprep.subr.bf16.mxu0 0
    %471 = vmatpush2.bf16.msra.mxu0 0
    %472 = vmatprep.subr.bf16.mxu0 0
    %473 = vmatpush2.bf16.msra.mxu0 0
    %474 = vmatprep.subr.bf16.mxu0 0
    %475 = vmatpush2.bf16.msra.mxu0 0
    %476 = vmatprep.subr.bf16.mxu0 0
    %477 = vmatpush2.bf16.msra.mxu0 0
    %478 = vmatprep.mubr.bf16.mxu0 0
    %479 = vmatmul.mubr.bf16.gmra.mxu0 %v444
    %v480 = vpop.f32.mrf.mxu0
    %v481 = vadd.f32 0.0, %v480
    %v482 = vpop.f32.mrf.mxu0
    %v483 = vpop.f32.mrf.mxu0
    %v484 = vadd.f32 0.0, %v483
    %v485 = vpop.f32.mrf.mxu0
    %486 = vdwg.mxu0
    %v487 = vunpack.c.l.bf16 %v437
    %v488 = vunpack.c.l.bf16 %v438
    %v489 = vadd.f32 %v487, %v481
    %v490 = vadd.f32 %v488, %v484
    %v491 = vxor.u32 %v489, 2147483648
    %v492 = vxor.u32 %v490, 2147483648
    %v493 = vmul.f32 %v491, 1.442695
    %v494 = vpow.pop %v493
    %v495 = vmul.f32 %v492, 1.442695
    %v496 = vpow.pop %v495
    %v497 = vadd.f32 %v494, 1.0
    %v498 = vadd.f32 %v496, 1.0
    %v499 = vrcp.pop %v497
    %v500 = vmul.f32 1.0, %v499
    %v501 = vrcp.pop %v498
    %v502 = vmul.f32 1.0, %v501
    %v503 = vtanh.pop %v489
    %v504 = vtanh.pop %v490
    %v505 = vmul.f32 %v500, %v434
    %v506 = vmul.f32 %v502, %v435
    %509 = vrot.lane.b32.xlu0 %v503, 32
    %v510 = vpop.permute.xlu0 %509
    %511 = vrot.lane.b32.xlu0 %v504, 32
    %v512 = vpop.permute.xlu0 %511
    %v515 = vmul.f32 %v500, %v510
    %v516 = vmul.f32 %v502, %v512
    %519 = vrot.lane.b32.xlu0 %v515, 32
    %v520 = vpop.permute.xlu0 %519
    %521 = vrot.lane.b32.xlu0 %v516, 32
    %v522 = vpop.permute.xlu0 %521
    %v525 = vadd.f32 %v505, %v520
    %v526 = vadd.f32 %v506, %v522
    %v527 = vtanh.pop %v525
    %v528 = vtanh.pop %v526
    %531 = vrot.lane.b32.xlu0 %v527, 32
    %v532 = vpop.permute.xlu0 %531
    %533 = vrot.lane.b32.xlu0 %v528, 32
    %v534 = vpop.permute.xlu0 %533
    %v537 = vmul.f32 %v500, %v532
    %v538 = vmul.f32 %v502, %v534
    %vm539 = vcmp.gt.s32.totalorder %v311, 1
    %vm540 = vcmp.gt.s32.totalorder %v314, 1
    %v541 = vsel %vm539, %v537, %v432
    %v542 = vsel %vm540, %v538, %v433
    %v543 = vsel %vm539, %v525, %v434
    %v544 = vsel %vm540, %v526, %v435
    %s545 = scalar_lea.vmem [#allocation2], 16
    %v546 = vld [vmem:[%s545] sm:$0xf]
    %v547 = vld [vmem:[%s545 + $0x4] sm:$0xf]
    %v548 = vpack.c.bf16 %v542, %v541
    %550 = vrot.lane.b32.xlu0 %v548, 64
    %v551 = vpop.permute.xlu0 %550
    %v553 = vsel %vm333, %v551, 0
    %555 = vmatprep.subr.bf16.mxu0 0
    %556 = vmatpush1.bf16.msra.mxu0 0
    %557 = vmatprep.subr.bf16.mxu0 0
    %558 = vmatpush1.bf16.msra.mxu0 0
    %559 = vmatprep.subr.bf16.mxu0 0
    %560 = vmatpush1.bf16.msra.mxu0 0
    %561 = vmatprep.subr.bf16.mxu0 0
    %562 = vmatpush1.bf16.msra.mxu0 0
    %563 = vmatprep.subr.bf16.mxu0 0
    %564 = vmatpush1.bf16.msra.mxu0 0
    %565 = vmatprep.subr.bf16.mxu0 0
    %566 = vmatpush1.bf16.msra.mxu0 0
    %567 = vmatprep.subr.bf16.mxu0 0
    %568 = vmatpush1.bf16.msra.mxu0 %v330
    %569 = vmatprep.subr.bf16.mxu0 0
    %570 = vmatpush1.bf16.msra.mxu0 %v329
    %571 = vmatprep.subr.bf16.mxu0 0
    %572 = vmatpush2.bf16.msra.mxu0 0
    %573 = vmatprep.subr.bf16.mxu0 0
    %574 = vmatpush2.bf16.msra.mxu0 0
    %575 = vmatprep.subr.bf16.mxu0 0
    %576 = vmatpush2.bf16.msra.mxu0 0
    %577 = vmatprep.subr.bf16.mxu0 0
    %578 = vmatpush2.bf16.msra.mxu0 0
    %579 = vmatprep.subr.bf16.mxu0 0
    %580 = vmatpush2.bf16.msra.mxu0 0
    %581 = vmatprep.subr.bf16.mxu0 0
    %582 = vmatpush2.bf16.msra.mxu0 0
    %583 = vmatprep.subr.bf16.mxu0 0
    %584 = vmatpush2.bf16.msra.mxu0 0
    %585 = vmatprep.subr.bf16.mxu0 0
    %586 = vmatpush2.bf16.msra.mxu0 0
    %587 = vmatprep.mubr.bf16.mxu0 0
    %588 = vmatmul.mubr.bf16.gmra.mxu0 %v553
    %v589 = vpop.f32.mrf.mxu0
    %v590 = vadd.f32 0.0, %v589
    %v591 = vpop.f32.mrf.mxu0
    %v592 = vpop.f32.mrf.mxu0
    %v593 = vadd.f32 0.0, %v592
    %v594 = vpop.f32.mrf.mxu0
    %595 = vdwg.mxu0
    %v596 = vunpack.c.l.bf16 %v546
    %v597 = vunpack.c.l.bf16 %v547
    %v598 = vadd.f32 %v596, %v590
    %v599 = vadd.f32 %v597, %v593
    %v600 = vxor.u32 %v598, 2147483648
    %v601 = vxor.u32 %v599, 2147483648
    %v602 = vmul.f32 %v600, 1.442695
    %v603 = vpow.pop %v602
    %v604 = vmul.f32 %v601, 1.442695
    %v605 = vpow.pop %v604
    %v606 = vadd.f32 %v603, 1.0
    %v607 = vadd.f32 %v605, 1.0
    %v608 = vrcp.pop %v606
    %v609 = vmul.f32 1.0, %v608
    %v610 = vrcp.pop %v607
    %v611 = vmul.f32 1.0, %v610
    %v612 = vtanh.pop %v598
    %v613 = vtanh.pop %v599
    %v614 = vmul.f32 %v609, %v543
    %v615 = vmul.f32 %v611, %v544
    %618 = vrot.lane.b32.xlu0 %v612, 32
    %v619 = vpop.permute.xlu0 %618
    %620 = vrot.lane.b32.xlu0 %v613, 32
    %v621 = vpop.permute.xlu0 %620
    %v624 = vmul.f32 %v609, %v619
    %v625 = vmul.f32 %v611, %v621
    %628 = vrot.lane.b32.xlu0 %v624, 32
    %v629 = vpop.permute.xlu0 %628
    %630 = vrot.lane.b32.xlu0 %v625, 32
    %v631 = vpop.permute.xlu0 %630
    %v634 = vadd.f32 %v614, %v629
    %v635 = vadd.f32 %v615, %v631
    %v636 = vtanh.pop %v634
    %v637 = vtanh.pop %v635
    %640 = vrot.lane.b32.xlu0 %v636, 32
    %v641 = vpop.permute.xlu0 %640
    %642 = vrot.lane.b32.xlu0 %v637, 32
    %v643 = vpop.permute.xlu0 %642
    %v646 = vmul.f32 %v609, %v641
    %v647 = vmul.f32 %v611, %v643
    %vm648 = vcmp.gt.s32.totalorder %v311, 2
    %vm649 = vcmp.gt.s32.totalorder %v314, 2
    %v650 = vsel %vm648, %v646, %v541
    %v651 = vsel %vm649, %v647, %v542
    %v652 = vsel %vm648, %v634, %v543
    %v653 = vsel %vm649, %v635, %v544
    %s654 = scalar_lea.vmem [#allocation2], 24
    %v655 = vld [vmem:[%s654] sm:$0xf]
    %v656 = vld [vmem:[%s654 + $0x4] sm:$0xf]
    %v657 = vpack.c.bf16 %v651, %v650
    %659 = vrot.lane.b32.xlu0 %v657, 64
    %v660 = vpop.permute.xlu0 %659
    %v662 = vsel %vm333, %v660, 0
    %664 = vmatprep.subr.bf16.mxu0 0
    %665 = vmatpush1.bf16.msra.mxu0 0
    %666 = vmatprep.subr.bf16.mxu0 0
    %667 = vmatpush1.bf16.msra.mxu0 0
    %668 = vmatprep.subr.bf16.mxu0 0
    %669 = vmatpush1.bf16.msra.mxu0 0
    %670 = vmatprep.subr.bf16.mxu0 0
    %671 = vmatpush1.bf16.msra.mxu0 0
    %672 = vmatprep.subr.bf16.mxu0 0
    %673 = vmatpush1.bf16.msra.mxu0 0
    %674 = vmatprep.subr.bf16.mxu0 0
    %675 = vmatpush1.bf16.msra.mxu0 0
    %676 = vmatprep.subr.bf16.mxu0 0
    %677 = vmatpush1.bf16.msra.mxu0 %v330
    %678 = vmatprep.subr.bf16.mxu0 0
    %679 = vmatpush1.bf16.msra.mxu0 %v329
    %680 = vmatprep.subr.bf16.mxu0 0
    %681 = vmatpush2.bf16.msra.mxu0 0
    %682 = vmatprep.subr.bf16.mxu0 0
    %683 = vmatpush2.bf16.msra.mxu0 0
    %684 = vmatprep.subr.bf16.mxu0 0
    %685 = vmatpush2.bf16.msra.mxu0 0
    %686 = vmatprep.subr.bf16.mxu0 0
    %687 = vmatpush2.bf16.msra.mxu0 0
    %688 = vmatprep.subr.bf16.mxu0 0
    %689 = vmatpush2.bf16.msra.mxu0 0
    %690 = vmatprep.subr.bf16.mxu0 0
    %691 = vmatpush2.bf16.msra.mxu0 0
    %692 = vmatprep.subr.bf16.mxu0 0
    %693 = vmatpush2.bf16.msra.mxu0 0
    %694 = vmatprep.subr.bf16.mxu0 0
    %695 = vmatpush2.bf16.msra.mxu0 0
    %696 = vmatprep.mubr.bf16.mxu0 0
    %697 = vmatmul.mubr.bf16.gmra.mxu0 %v662
    %v698 = vpop.f32.mrf.mxu0
    %v699 = vadd.f32 0.0, %v698
    %v700 = vpop.f32.mrf.mxu0
    %v701 = vpop.f32.mrf.mxu0
    %v702 = vadd.f32 0.0, %v701
    %v703 = vpop.f32.mrf.mxu0
    %704 = vdwg.mxu0
    %v705 = vunpack.c.l.bf16 %v655
    %v706 = vunpack.c.l.bf16 %v656
    %v707 = vadd.f32 %v705, %v699
    %v708 = vadd.f32 %v706, %v702
    %v709 = vxor.u32 %v707, 2147483648
    %v710 = vxor.u32 %v708, 2147483648
    %v711 = vmul.f32 %v709, 1.442695
    %v712 = vpow.pop %v711
    %v713 = vmul.f32 %v710, 1.442695
    %v714 = vpow.pop %v713
    %v715 = vadd.f32 %v712, 1.0
    %v716 = vadd.f32 %v714, 1.0
    %v717 = vrcp.pop %v715
    %v718 = vmul.f32 1.0, %v717
    %v719 = vrcp.pop %v716
    %v720 = vmul.f32 1.0, %v719
    %v721 = vtanh.pop %v707
    %v722 = vtanh.pop %v708
    %v723 = vmul.f32 %v718, %v652
    %v724 = vmul.f32 %v720, %v653
    %727 = vrot.lane.b32.xlu0 %v721, 32
    %v728 = vpop.permute.xlu0 %727
    %729 = vrot.lane.b32.xlu0 %v722, 32
    %v730 = vpop.permute.xlu0 %729
    %v733 = vmul.f32 %v718, %v728
    %v734 = vmul.f32 %v720, %v730
    %737 = vrot.lane.b32.xlu0 %v733, 32
    %v738 = vpop.permute.xlu0 %737
    %739 = vrot.lane.b32.xlu0 %v734, 32
    %v740 = vpop.permute.xlu0 %739
    %v743 = vadd.f32 %v723, %v738
    %v744 = vadd.f32 %v724, %v740
    %v745 = vtanh.pop %v743
    %v746 = vtanh.pop %v744
    %749 = vrot.lane.b32.xlu0 %v745, 32
    %v750 = vpop.permute.xlu0 %749
    %751 = vrot.lane.b32.xlu0 %v746, 32
    %v752 = vpop.permute.xlu0 %751
    %v755 = vmul.f32 %v718, %v750
    %v756 = vmul.f32 %v720, %v752
    %vm757 = vcmp.gt.s32.totalorder %v311, 3
    %vm758 = vcmp.gt.s32.totalorder %v314, 3
    %v759 = vsel %vm757, %v755, %v650
    %v760 = vsel %vm758, %v756, %v651
    %v761 = vsel %vm757, %v743, %v652
    %v762 = vsel %vm758, %v744, %v653
    %s763 = scalar_lea.vmem [#allocation2], 32
    %v764 = vld [vmem:[%s763] sm:$0xf]
    %v765 = vld [vmem:[%s763 + $0x4] sm:$0xf]
    %v766 = vpack.c.bf16 %v760, %v759
    %768 = vrot.lane.b32.xlu0 %v766, 64
    %v769 = vpop.permute.xlu0 %768
    %v771 = vsel %vm333, %v769, 0
    %773 = vmatprep.subr.bf16.mxu0 0
    %774 = vmatpush1.bf16.msra.mxu0 0
    %775 = vmatprep.subr.bf16.mxu0 0
    %776 = vmatpush1.bf16.msra.mxu0 0
    %777 = vmatprep.subr.bf16.mxu0 0
    %778 = vmatpush1.bf16.msra.mxu0 0
    %779 = vmatprep.subr.bf16.mxu0 0
    %780 = vmatpush1.bf16.msra.mxu0 0
    %781 = vmatprep.subr.bf16.mxu0 0
    %782 = vmatpush1.bf16.msra.mxu0 0
    %783 = vmatprep.subr.bf16.mxu0 0
    %784 = vmatpush1.bf16.msra.mxu0 0
    %785 = vmatprep.subr.bf16.mxu0 0
    %786 = vmatpush1.bf16.msra.mxu0 %v330
    %787 = vmatprep.subr.bf16.mxu0 0
    %788 = vmatpush1.bf16.msra.mxu0 %v329
    %789 = vmatprep.subr.bf16.mxu0 0
    %790 = vmatpush2.bf16.msra.mxu0 0
    %791 = vmatprep.subr.bf16.mxu0 0
    %792 = vmatpush2.bf16.msra.mxu0 0
    %793 = vmatprep.subr.bf16.mxu0 0
    %794 = vmatpush2.bf16.msra.mxu0 0
    %795 = vmatprep.subr.bf16.mxu0 0
    %796 = vmatpush2.bf16.msra.mxu0 0
    %797 = vmatprep.subr.bf16.mxu0 0
    %798 = vmatpush2.bf16.msra.mxu0 0
    %799 = vmatprep.subr.bf16.mxu0 0
    %800 = vmatpush2.bf16.msra.mxu0 0
    %801 = vmatprep.subr.bf16.mxu0 0
    %802 = vmatpush2.bf16.msra.mxu0 0
    %803 = vmatprep.subr.bf16.mxu0 0
    %804 = vmatpush2.bf16.msra.mxu0 0
    %805 = vmatprep.mubr.bf16.mxu0 0
    %806 = vmatmul.mubr.bf16.gmra.mxu0 %v771
    %v807 = vpop.f32.mrf.mxu0
    %v808 = vadd.f32 0.0, %v807
    %v809 = vpop.f32.mrf.mxu0
    %v810 = vpop.f32.mrf.mxu0
    %v811 = vadd.f32 0.0, %v810
    %v812 = vpop.f32.mrf.mxu0
    %813 = vdwg.mxu0
    %v814 = vunpack.c.l.bf16 %v764
    %v815 = vunpack.c.l.bf16 %v765
    %v816 = vadd.f32 %v814, %v808
    %v817 = vadd.f32 %v815, %v811
    %v818 = vxor.u32 %v816, 2147483648
    %v819 = vxor.u32 %v817, 2147483648
    %v820 = vmul.f32 %v818, 1.442695
    %v821 = vpow.pop %v820
    %v822 = vmul.f32 %v819, 1.442695
    %v823 = vpow.pop %v822
    %v824 = vadd.f32 %v821, 1.0
    %v825 = vadd.f32 %v823, 1.0
    %v826 = vrcp.pop %v824
    %v827 = vmul.f32 1.0, %v826
    %v828 = vrcp.pop %v825
    %v829 = vmul.f32 1.0, %v828
    %v830 = vtanh.pop %v816
    %v831 = vtanh.pop %v817
    %v832 = vmul.f32 %v827, %v761
    %v833 = vmul.f32 %v829, %v762
    %836 = vrot.lane.b32.xlu0 %v830, 32
    %v837 = vpop.permute.xlu0 %836
    %838 = vrot.lane.b32.xlu0 %v831, 32
    %v839 = vpop.permute.xlu0 %838
    %v842 = vmul.f32 %v827, %v837
    %v843 = vmul.f32 %v829, %v839
    %846 = vrot.lane.b32.xlu0 %v842, 32
    %v847 = vpop.permute.xlu0 %846
    %848 = vrot.lane.b32.xlu0 %v843, 32
    %v849 = vpop.permute.xlu0 %848
    %v852 = vadd.f32 %v832, %v847
    %v853 = vadd.f32 %v833, %v849
    %v854 = vtanh.pop %v852
    %v855 = vtanh.pop %v853
    %858 = vrot.lane.b32.xlu0 %v854, 32
    %v859 = vpop.permute.xlu0 %858
    %860 = vrot.lane.b32.xlu0 %v855, 32
    %v861 = vpop.permute.xlu0 %860
    %v864 = vmul.f32 %v827, %v859
    %v865 = vmul.f32 %v829, %v861
    %vm866 = vcmp.gt.s32.totalorder %v311, 4
    %vm867 = vcmp.gt.s32.totalorder %v314, 4
    %v868 = vsel %vm866, %v864, %v759
    %v869 = vsel %vm867, %v865, %v760
    %v870 = vsel %vm866, %v852, %v761
    %v871 = vsel %vm867, %v853, %v762
    %s872 = scalar_lea.vmem [#allocation2], 40
    %v873 = vld [vmem:[%s872] sm:$0xf]
    %v874 = vld [vmem:[%s872 + $0x4] sm:$0xf]
    %v875 = vpack.c.bf16 %v869, %v868
    %877 = vrot.lane.b32.xlu0 %v875, 64
    %v878 = vpop.permute.xlu0 %877
    %v880 = vsel %vm333, %v878, 0
    %882 = vmatprep.subr.bf16.mxu0 0
    %883 = vmatpush1.bf16.msra.mxu0 0
    %884 = vmatprep.subr.bf16.mxu0 0
    %885 = vmatpush1.bf16.msra.mxu0 0
    %886 = vmatprep.subr.bf16.mxu0 0
    %887 = vmatpush1.bf16.msra.mxu0 0
    %888 = vmatprep.subr.bf16.mxu0 0
    %889 = vmatpush1.bf16.msra.mxu0 0
    %890 = vmatprep.subr.bf16.mxu0 0
    %891 = vmatpush1.bf16.msra.mxu0 0
    %892 = vmatprep.subr.bf16.mxu0 0
    %893 = vmatpush1.bf16.msra.mxu0 0
    %894 = vmatprep.subr.bf16.mxu0 0
    %895 = vmatpush1.bf16.msra.mxu0 %v330
    %896 = vmatprep.subr.bf16.mxu0 0
    %897 = vmatpush1.bf16.msra.mxu0 %v329
    %898 = vmatprep.subr.bf16.mxu0 0
    %899 = vmatpush2.bf16.msra.mxu0 0
    %900 = vmatprep.subr.bf16.mxu0 0
    %901 = vmatpush2.bf16.msra.mxu0 0
    %902 = vmatprep.subr.bf16.mxu0 0
    %903 = vmatpush2.bf16.msra.mxu0 0
    %904 = vmatprep.subr.bf16.mxu0 0
    %905 = vmatpush2.bf16.msra.mxu0 0
    %906 = vmatprep.subr.bf16.mxu0 0
    %907 = vmatpush2.bf16.msra.mxu0 0
    %908 = vmatprep.subr.bf16.mxu0 0
    %909 = vmatpush2.bf16.msra.mxu0 0
    %910 = vmatprep.subr.bf16.mxu0 0
    %911 = vmatpush2.bf16.msra.mxu0 0
    %912 = vmatprep.subr.bf16.mxu0 0
    %913 = vmatpush2.bf16.msra.mxu0 0
    %914 = vmatprep.mubr.bf16.mxu0 0
    %915 = vmatmul.mubr.bf16.gmra.mxu0 %v880
    %v916 = vpop.f32.mrf.mxu0
    %v917 = vadd.f32 0.0, %v916
    %v918 = vpop.f32.mrf.mxu0
    %v919 = vpop.f32.mrf.mxu0
    %v920 = vadd.f32 0.0, %v919
    %v921 = vpop.f32.mrf.mxu0
    %922 = vdwg.mxu0
    %v923 = vunpack.c.l.bf16 %v873
    %v924 = vunpack.c.l.bf16 %v874
    %v925 = vadd.f32 %v923, %v917
    %v926 = vadd.f32 %v924, %v920
    %v927 = vxor.u32 %v925, 2147483648
    %v928 = vxor.u32 %v926, 2147483648
    %v929 = vmul.f32 %v927, 1.442695
    %v930 = vpow.pop %v929
    %v931 = vmul.f32 %v928, 1.442695
    %v932 = vpow.pop %v931
    %v933 = vadd.f32 %v930, 1.0
    %v934 = vadd.f32 %v932, 1.0
    %v935 = vrcp.pop %v933
    %v936 = vmul.f32 1.0, %v935
    %v937 = vrcp.pop %v934
    %v938 = vmul.f32 1.0, %v937
    %v939 = vtanh.pop %v925
    %v940 = vtanh.pop %v926
    %v941 = vmul.f32 %v936, %v870
    %v942 = vmul.f32 %v938, %v871
    %945 = vrot.lane.b32.xlu0 %v939, 32
    %v946 = vpop.permute.xlu0 %945
    %947 = vrot.lane.b32.xlu0 %v940, 32
    %v948 = vpop.permute.xlu0 %947
    %v951 = vmul.f32 %v936, %v946
    %v952 = vmul.f32 %v938, %v948
    %955 = vrot.lane.b32.xlu0 %v951, 32
    %v956 = vpop.permute.xlu0 %955
    %957 = vrot.lane.b32.xlu0 %v952, 32
    %v958 = vpop.permute.xlu0 %957
    %v961 = vadd.f32 %v941, %v956
    %v962 = vadd.f32 %v942, %v958
    %v963 = vtanh.pop %v961
    %v964 = vtanh.pop %v962
    %967 = vrot.lane.b32.xlu0 %v963, 32
    %v968 = vpop.permute.xlu0 %967
    %969 = vrot.lane.b32.xlu0 %v964, 32
    %v970 = vpop.permute.xlu0 %969
    %v973 = vmul.f32 %v936, %v968
    %v974 = vmul.f32 %v938, %v970
    %vm975 = vcmp.gt.s32.totalorder %v311, 5
    %vm976 = vcmp.gt.s32.totalorder %v314, 5
    %v977 = vsel %vm975, %v973, %v868
    %v978 = vsel %vm976, %v974, %v869
    %v979 = vsel %vm975, %v961, %v870
    %v980 = vsel %vm976, %v962, %v871
    %s981 = scalar_lea.vmem [#allocation2], 48
    %v982 = vld [vmem:[%s981] sm:$0xf]
    %v983 = vld [vmem:[%s981 + $0x4] sm:$0xf]
    %v984 = vpack.c.bf16 %v978, %v977
    %986 = vrot.lane.b32.xlu0 %v984, 64
    %v987 = vpop.permute.xlu0 %986
    %v989 = vsel %vm333, %v987, 0
    %991 = vmatprep.subr.bf16.mxu0 0
    %992 = vmatpush1.bf16.msra.mxu0 0
    %993 = vmatprep.subr.bf16.mxu0 0
    %994 = vmatpush1.bf16.msra.mxu0 0
    %995 = vmatprep.subr.bf16.mxu0 0
    %996 = vmatpush1.bf16.msra.mxu0 0
    %997 = vmatprep.subr.bf16.mxu0 0
    %998 = vmatpush1.bf16.msra.mxu0 0
    %999 = vmatprep.subr.bf16.mxu0 0
    %1000 = vmatpush1.bf16.msra.mxu0 0
    %1001 = vmatprep.subr.bf16.mxu0 0
    %1002 = vmatpush1.bf16.msra.mxu0 0
    %1003 = vmatprep.subr.bf16.mxu0 0
    %1004 = vmatpush1.bf16.msra.mxu0 %v330
    %1005 = vmatprep.subr.bf16.mxu0 0
    %1006 = vmatpush1.bf16.msra.mxu0 %v329
    %1007 = vmatprep.subr.bf16.mxu0 0
    %1008 = vmatpush2.bf16.msra.mxu0 0
    %1009 = vmatprep.subr.bf16.mxu0 0
    %1010 = vmatpush2.bf16.msra.mxu0 0
    %1011 = vmatprep.subr.bf16.mxu0 0
    %1012 = vmatpush2.bf16.msra.mxu0 0
    %1013 = vmatprep.subr.bf16.mxu0 0
    %1014 = vmatpush2.bf16.msra.mxu0 0
    %1015 = vmatprep.subr.bf16.mxu0 0
    %1016 = vmatpush2.bf16.msra.mxu0 0
    %1017 = vmatprep.subr.bf16.mxu0 0
    %1018 = vmatpush2.bf16.msra.mxu0 0
    %1019 = vmatprep.subr.bf16.mxu0 0
    %1020 = vmatpush2.bf16.msra.mxu0 0
    %1021 = vmatprep.subr.bf16.mxu0 0
    %1022 = vmatpush2.bf16.msra.mxu0 0
    %1023 = vmatprep.mubr.bf16.mxu0 0
    %1024 = vmatmul.mubr.bf16.gmra.mxu0 %v989
    %v1025 = vpop.f32.mrf.mxu0
    %v1026 = vadd.f32 0.0, %v1025
    %v1027 = vpop.f32.mrf.mxu0
    %v1028 = vpop.f32.mrf.mxu0
    %v1029 = vadd.f32 0.0, %v1028
    %v1030 = vpop.f32.mrf.mxu0
    %1031 = vdwg.mxu0
    %v1032 = vunpack.c.l.bf16 %v982
    %v1033 = vunpack.c.l.bf16 %v983
    %v1034 = vadd.f32 %v1032, %v1026
    %v1035 = vadd.f32 %v1033, %v1029
    %v1036 = vxor.u32 %v1034, 2147483648
    %v1037 = vxor.u32 %v1035, 2147483648
    %v1038 = vmul.f32 %v1036, 1.442695
    %v1039 = vpow.pop %v1038
    %v1040 = vmul.f32 %v1037, 1.442695
    %v1041 = vpow.pop %v1040
    %v1042 = vadd.f32 %v1039, 1.0
    %v1043 = vadd.f32 %v1041, 1.0
    %v1044 = vrcp.pop %v1042
    %v1045 = vmul.f32 1.0, %v1044
    %v1046 = vrcp.pop %v1043
    %v1047 = vmul.f32 1.0, %v1046
    %v1048 = vtanh.pop %v1034
    %v1049 = vtanh.pop %v1035
    %v1050 = vmul.f32 %v1045, %v979
    %v1051 = vmul.f32 %v1047, %v980
    %1054 = vrot.lane.b32.xlu0 %v1048, 32
    %v1055 = vpop.permute.xlu0 %1054
    %1056 = vrot.lane.b32.xlu0 %v1049, 32
    %v1057 = vpop.permute.xlu0 %1056
    %v1060 = vmul.f32 %v1045, %v1055
    %v1061 = vmul.f32 %v1047, %v1057
    %1064 = vrot.lane.b32.xlu0 %v1060, 32
    %v1065 = vpop.permute.xlu0 %1064
    %1066 = vrot.lane.b32.xlu0 %v1061, 32
    %v1067 = vpop.permute.xlu0 %1066
    %v1070 = vadd.f32 %v1050, %v1065
    %v1071 = vadd.f32 %v1051, %v1067
    %v1072 = vtanh.pop %v1070
    %v1073 = vtanh.pop %v1071
    %1076 = vrot.lane.b32.xlu0 %v1072, 32
    %v1077 = vpop.permute.xlu0 %1076
    %1078 = vrot.lane.b32.xlu0 %v1073, 32
    %v1079 = vpop.permute.xlu0 %1078
    %v1082 = vmul.f32 %v1045, %v1077
    %v1083 = vmul.f32 %v1047, %v1079
    %vm1084 = vcmp.gt.s32.totalorder %v311, 6
    %vm1085 = vcmp.gt.s32.totalorder %v314, 6
    %v1086 = vsel %vm1084, %v1082, %v977
    %v1087 = vsel %vm1085, %v1083, %v978
    %v1088 = vsel %vm1084, %v1070, %v979
    %v1089 = vsel %vm1085, %v1071, %v980
    %s1090 = scalar_lea.vmem [#allocation2], 56
    %v1091 = vld [vmem:[%s1090] sm:$0xf]
    %v1092 = vld [vmem:[%s1090 + $0x4] sm:$0xf]
    %v1093 = vpack.c.bf16 %v1087, %v1086
    %1095 = vrot.lane.b32.xlu0 %v1093, 64
    %v1096 = vpop.permute.xlu0 %1095
    %v1098 = vsel %vm333, %v1096, 0
    %1100 = vmatprep.subr.bf16.mxu0 0
    %1101 = vmatpush1.bf16.msra.mxu0 0
    %1102 = vmatprep.subr.bf16.mxu0 0
    %1103 = vmatpush1.bf16.msra.mxu0 0
    %1104 = vmatprep.subr.bf16.mxu0 0
    %1105 = vmatpush1.bf16.msra.mxu0 0
    %1106 = vmatprep.subr.bf16.mxu0 0
    %1107 = vmatpush1.bf16.msra.mxu0 0
    %1108 = vmatprep.subr.bf16.mxu0 0
    %1109 = vmatpush1.bf16.msra.mxu0 0
    %1110 = vmatprep.subr.bf16.mxu0 0
    %1111 = vmatpush1.bf16.msra.mxu0 0
    %1112 = vmatprep.subr.bf16.mxu0 0
    %1113 = vmatpush1.bf16.msra.mxu0 %v330
    %1114 = vmatprep.subr.bf16.mxu0 0
    %1115 = vmatpush1.bf16.msra.mxu0 %v329
    %1116 = vmatprep.subr.bf16.mxu0 0
    %1117 = vmatpush2.bf16.msra.mxu0 0
    %1118 = vmatprep.subr.bf16.mxu0 0
    %1119 = vmatpush2.bf16.msra.mxu0 0
    %1120 = vmatprep.subr.bf16.mxu0 0
    %1121 = vmatpush2.bf16.msra.mxu0 0
    %1122 = vmatprep.subr.bf16.mxu0 0
    %1123 = vmatpush2.bf16.msra.mxu0 0
    %1124 = vmatprep.subr.bf16.mxu0 0
    %1125 = vmatpush2.bf16.msra.mxu0 0
    %1126 = vmatprep.subr.bf16.mxu0 0
    %1127 = vmatpush2.bf16.msra.mxu0 0
    %1128 = vmatprep.subr.bf16.mxu0 0
    %1129 = vmatpush2.bf16.msra.mxu0 0
    %1130 = vmatprep.subr.bf16.mxu0 0
    %1131 = vmatpush2.bf16.msra.mxu0 0
    %1132 = vmatprep.mubr.bf16.mxu0 0
    %1133 = vmatmul.mubr.bf16.gmra.mxu0 %v1098
    %v1134 = vpop.f32.mrf.mxu0
    %v1135 = vadd.f32 0.0, %v1134
    %v1136 = vpop.f32.mrf.mxu0
    %v1137 = vpop.f32.mrf.mxu0
    %v1138 = vadd.f32 0.0, %v1137
    %v1139 = vpop.f32.mrf.mxu0
    %1140 = vdwg.mxu0
    %v1141 = vunpack.c.l.bf16 %v1091
    %v1142 = vunpack.c.l.bf16 %v1092
    %v1143 = vadd.f32 %v1141, %v1135
    %v1144 = vadd.f32 %v1142, %v1138
    %v1145 = vxor.u32 %v1143, 2147483648
    %v1146 = vxor.u32 %v1144, 2147483648
    %v1147 = vmul.f32 %v1145, 1.442695
    %v1148 = vpow.pop %v1147
    %v1149 = vmul.f32 %v1146, 1.442695
    %v1150 = vpow.pop %v1149
    %v1151 = vadd.f32 %v1148, 1.0
    %v1152 = vadd.f32 %v1150, 1.0
    %v1153 = vrcp.pop %v1151
    %v1154 = vmul.f32 1.0, %v1153
    %v1155 = vrcp.pop %v1152
    %v1156 = vmul.f32 1.0, %v1155
    %v1157 = vtanh.pop %v1143
    %v1158 = vtanh.pop %v1144
    %v1159 = vmul.f32 %v1154, %v1088
    %v1160 = vmul.f32 %v1156, %v1089
    %1163 = vrot.lane.b32.xlu0 %v1157, 32
    %v1164 = vpop.permute.xlu0 %1163
    %1165 = vrot.lane.b32.xlu0 %v1158, 32
    %v1166 = vpop.permute.xlu0 %1165
    %v1169 = vmul.f32 %v1154, %v1164
    %v1170 = vmul.f32 %v1156, %v1166
    %1173 = vrot.lane.b32.xlu0 %v1169, 32
    %v1174 = vpop.permute.xlu0 %1173
    %1175 = vrot.lane.b32.xlu0 %v1170, 32
    %v1176 = vpop.permute.xlu0 %1175
    %v1179 = vadd.f32 %v1159, %v1174
    %v1180 = vadd.f32 %v1160, %v1176
    %v1181 = vtanh.pop %v1179
    %v1182 = vtanh.pop %v1180
    %1185 = vrot.lane.b32.xlu0 %v1181, 32
    %v1186 = vpop.permute.xlu0 %1185
    %1187 = vrot.lane.b32.xlu0 %v1182, 32
    %v1188 = vpop.permute.xlu0 %1187
    %v1191 = vmul.f32 %v1154, %v1186
    %v1192 = vmul.f32 %v1156, %v1188
    %vm1193 = vcmp.gt.s32.totalorder %v311, 7
    %vm1194 = vcmp.gt.s32.totalorder %v314, 7
    %v1195 = vsel %vm1193, %v1191, %v1086
    %v1196 = vsel %vm1194, %v1192, %v1087
    %v1197 = vld [vmem:[%s5 + $0x1] sm:$0x1]
    %v1198 = vld [vmem:[%s5 + $0x2] sm:$0x1]
    %1201 = vrot.lane.b32.xlu0 %v1195, 64
    %v1202 = vpop.permute.xlu0 %1201
    %1203 = vrot.lane.b32.xlu0 %v1196, 64
    %v1204 = vpop.permute.xlu0 %1203
    %v1207 = vsel %vm333, %v1202, 0.0
    %1208 = vadd.xlane.f32.xlu0 %v1207
    %v1209 = vpop.xlane.xlu0 %1208
    %v1210 = vsel %vm333, %v1204, 0.0
    %1211 = vadd.xlane.f32.xlu0 %v1210
    %v1212 = vpop.xlane.xlu0 %1211
    %v1213 = vrcp.pop 32.0
    %v1214 = vmul.f32 %v1209, %v1213
    %v1215 = vmul.f32 %v1212, %v1213
    %v1216 = vsub.f32 %v1195, %v1214
    %v1217 = vsub.f32 %v1196, %v1215
    %v1218 = vmul.f32 %v1216, %v1216
    %v1219 = vmul.f32 %v1217, %v1217
    %1222 = vrot.lane.b32.xlu0 %v1218, 64
    %v1223 = vpop.permute.xlu0 %1222
    %1224 = vrot.lane.b32.xlu0 %v1219, 64
    %v1225 = vpop.permute.xlu0 %1224
    %v1228 = vsel %vm333, %v1223, 0.0
    %1229 = vadd.xlane.f32.xlu0 %v1228
    %v1230 = vpop.xlane.xlu0 %1229
    %v1231 = vsel %vm333, %v1225, 0.0
    %1232 = vadd.xlane.f32.xlu0 %v1231
    %v1233 = vpop.xlane.xlu0 %1232
    %v1234 = vmul.f32 %v1230, %v1213
    %v1235 = vmul.f32 %v1233, %v1213
    %v1236 = vadd.f32 %v1234, 1e-05
    %v1237 = vadd.f32 %v1235, 1e-05
    %v1238 = vrsqrt.pop %v1236
    %v1239 = vrsqrt.pop %v1237
    %v1240 = vmul.f32 %v1216, %v1238
    %v1241 = vmul.f32 %v1217, %v1239
    %v1243 = vlaneseq
    %v1244 = vshrl.u32 %v1243, 7
    %v1245 = vsub.s32 0, %v1244
    %v1246 = vrot.slane %v1197, %v1245
    %1247 = vrot.lane.b32.xlu0 %v1246, 64
    %v1248 = vpop.permute.xlu0 %1247
    %v1250 = vmul.f32 %v1240, %v1248
    %v1251 = vmul.f32 %v1241, %v1248
    %v1253 = vlaneseq
    %v1254 = vshrl.u32 %v1253, 7
    %v1255 = vsub.s32 0, %v1254
    %v1256 = vrot.slane %v1198, %v1255
    %1257 = vrot.lane.b32.xlu0 %v1256, 64
    %v1258 = vpop.permute.xlu0 %1257
    %v1260 = vadd.f32 %v1250, %v1258
    %v1261 = vadd.f32 %v1251, %v1258
    %v1262 = vld [vmem:[%s2] sm:$0xff]
    %v1263 = vld [vmem:[%s2 + $0x8] sm:$0xff]
    %1266 = vrot.lane.b32.xlu0 %v1260, 64
    %v1267 = vpop.permute.xlu0 %1266
    %1268 = vrot.lane.b32.xlu0 %v1261, 64
    %v1269 = vpop.permute.xlu0 %1268
    %1274 = vrot.lane.b32.xlu0 %v1262, 32
    %v1275 = vpop.permute.xlu0 %1274
    %1276 = vrot.lane.b32.xlu0 %v1263, 32
    %v1277 = vpop.permute.xlu0 %1276
    %v1280 = vsel %vm333, %v1267, %v1275
    %v1281 = vsel %vm333, %v1269, %v1277
    %v1282 = vld [vmem:[%s5 + $0x3] sm:$0x1]
    %v1283 = vld [vmem:[%s5 + $0x4] sm:$0x1]
    %vm1284 = vcmask 326656
    %v1285 = vsel %vm1284, %v1280, 0.0
    %1286 = vadd.xlane.f32.xlu0 %v1285
    %v1287 = vpop.xlane.xlu0 %1286
    %v1288 = vsel %vm1284, %v1281, 0.0
    %1289 = vadd.xlane.f32.xlu0 %v1288
    %v1290 = vpop.xlane.xlu0 %1289
    %v1291 = vrcp.pop 40.0
    %v1292 = vmul.f32 %v1287, %v1291
    %v1293 = vmul.f32 %v1290, %v1291
    %v1294 = vsub.f32 %v1280, %v1292
    %v1295 = vsub.f32 %v1281, %v1293
    %v1296 = vmul.f32 %v1294, %v1294
    %v1297 = vmul.f32 %v1295, %v1295
    %v1298 = vsel %vm1284, %v1296, 0.0
    %1299 = vadd.xlane.f32.xlu0 %v1298
    %v1300 = vpop.xlane.xlu0 %1299
    %v1301 = vsel %vm1284, %v1297, 0.0
    %1302 = vadd.xlane.f32.xlu0 %v1301
    %v1303 = vpop.xlane.xlu0 %1302
    %v1304 = vmul.f32 %v1300, %v1291
    %v1305 = vmul.f32 %v1303, %v1291
    %v1306 = vadd.f32 %v1304, 1e-05
    %v1307 = vadd.f32 %v1305, 1e-05
    %v1308 = vrsqrt.pop %v1306
    %v1309 = vrsqrt.pop %v1307
    %v1310 = vmul.f32 %v1294, %v1308
    %v1311 = vmul.f32 %v1295, %v1309
    %v1313 = vlaneseq
    %v1314 = vshrl.u32 %v1313, 7
    %v1315 = vsub.s32 0, %v1314
    %v1316 = vrot.slane %v1282, %v1315
    %v1318 = vmul.f32 %v1310, %v1316
    %v1319 = vmul.f32 %v1311, %v1316
    %v1321 = vlaneseq
    %v1322 = vshrl.u32 %v1321, 7
    %v1323 = vsub.s32 0, %v1322
    %v1324 = vrot.slane %v1283, %v1323
    %v1326 = vadd.f32 %v1318, %v1324
    %v1327 = vadd.f32 %v1319, %v1324
    %v1328 = vld [vmem:[%s6] sm:$0xff]
    %v1329 = vld [vmem:[%s6 + $0x8] sm:$0xff]
    %v1330 = vld [vmem:[%s6 + $0x10] sm:$0xff]
    %v1331 = vld [vmem:[%s6 + $0x18] sm:$0xff]
    %v1332 = vld [vmem:[%s6 + $0x20] sm:$0xff]
    %v1333 = vld [vmem:[%s5 + $0x5] sm:$0x1]
    %v1335 = vlaneseq
    %v1336 = vshrl.u32 %v1335, 7
    %v1337 = vsub.s32 0, %v1336
    %v1338 = vrot.slane %v1333, %v1337
    %v1341 = vsel %vm1284, %v1326, 0
    %v1344 = vsel %vm1284, %v1327, 0
    %1346 = vmatprep.subr.mxu0 0.0
    %1347 = vmatpush1.msra.mxu0 0.0
    %1348 = vmatprep.subr.mxu0 0.0
    %1349 = vmatpush1.msra.mxu0 0.0
    %1350 = vmatprep.subr.mxu0 0.0
    %1351 = vmatpush1.msra.mxu0 0.0
    %1352 = vmatprep.subr.mxu0 0.0
    %1353 = vmatpush1.msra.mxu0 0.0
    %1354 = vmatprep.subr.mxu0 0.0
    %1355 = vmatpush1.msra.mxu0 0.0
    %1356 = vmatprep.subr.mxu0 0.0
    %1357 = vmatpush1.msra.mxu0 0.0
    %1358 = vmatprep.subr.mxu0 0.0
    %1359 = vmatpush1.msra.mxu0 0.0
    %1360 = vmatprep.subr.mxu0 0.0
    %1361 = vmatpush1.msra.mxu0 0.0
    %1362 = vmatprep.subr.mxu0 0.0
    %1363 = vmatpush1.msra.mxu0 0.0
    %1364 = vmatprep.subr.mxu0 0.0
    %1365 = vmatpush1.msra.mxu0 0.0
    %1366 = vmatprep.subr.mxu0 0.0
    %1367 = vmatpush1.msra.mxu0 0.0
    %1368 = vmatprep.subr.mxu0 0.0
    %1369 = vmatpush1.msra.mxu0 %v1332
    %1370 = vmatprep.subr.mxu0 0.0
    %1371 = vmatpush1.msra.mxu0 %v1331
    %1372 = vmatprep.subr.mxu0 0.0
    %1373 = vmatpush1.msra.mxu0 %v1330
    %1374 = vmatprep.subr.mxu0 0.0
    %1375 = vmatpush1.msra.mxu0 %v1329
    %1376 = vmatprep.subr.mxu0 0.0
    %1377 = vmatpush1.msra.mxu0 %v1328
    %1378 = vmatprep.subr.mxu0 0.0
    %1379 = vmatpush2.msra.mxu0 0.0
    %1380 = vmatprep.subr.mxu0 0.0
    %1381 = vmatpush2.msra.mxu0 0.0
    %1382 = vmatprep.subr.mxu0 0.0
    %1383 = vmatpush2.msra.mxu0 0.0
    %1384 = vmatprep.subr.mxu0 0.0
    %1385 = vmatpush2.msra.mxu0 0.0
    %1386 = vmatprep.subr.mxu0 0.0
    %1387 = vmatpush2.msra.mxu0 0.0
    %1388 = vmatprep.subr.mxu0 0.0
    %1389 = vmatpush2.msra.mxu0 0.0
    %1390 = vmatprep.subr.mxu0 0.0
    %1391 = vmatpush2.msra.mxu0 0.0
    %1392 = vmatprep.subr.mxu0 0.0
    %1393 = vmatpush2.msra.mxu0 0.0
    %1394 = vmatprep.subr.mxu0 0.0
    %1395 = vmatpush2.msra.mxu0 0.0
    %1396 = vmatprep.subr.mxu0 0.0
    %1397 = vmatpush2.msra.mxu0 0.0
    %1398 = vmatprep.subr.mxu0 0.0
    %1399 = vmatpush2.msra.mxu0 0.0
    %1400 = vmatprep.subr.mxu0 0.0
    %1401 = vmatpush2.msra.mxu0 0.0
    %1402 = vmatprep.subr.mxu0 0.0
    %1403 = vmatpush2.msra.mxu0 0.0
    %1404 = vmatprep.subr.mxu0 0.0
    %1405 = vmatpush2.msra.mxu0 0.0
    %1406 = vmatprep.subr.mxu0 0.0
    %1407 = vmatpush2.msra.mxu0 0.0
    %1408 = vmatprep.subr.mxu0 0.0
    %1409 = vmatpush2.msra.mxu0 0.0
    %1410 = vmatprep.mubr.f32.mxu0 0.0
    %1411 = vmatmul.mubr.f32.gmra.mxu0 %v1341
    %v1412 = vpop.f32.mrf.mxu0
    %v1413 = vadd.f32 %v1338, %v1412
    %v1414 = vpop.f32.mrf.mxu0
    %1415 = vmatprep.mubr.f32.mxu0 0.0
    %1416 = vmatmul.mubr.f32.gmra.mxu0 %v1344
    %v1417 = vpop.f32.mrf.mxu0
    %v1418 = vadd.f32 %v1338, %v1417
    %v1419 = vpop.f32.mrf.mxu0
    %1420 = vdwg.mxu0
    %v1421 = vld [vmem:[%s5 + $0x6] sm:$0x1]
    %v1422 = vld [vmem:[%s5 + $0x7] sm:$0x1]
    %vm1423 = vcmask 408576
    %v1424 = vsel %vm1423, %v1413, 0.0
    %1425 = vadd.xlane.f32.xlu0 %v1424
    %v1426 = vpop.xlane.xlu0 %1425
    %v1427 = vsel %vm1423, %v1418, 0.0
    %1428 = vadd.xlane.f32.xlu0 %v1427
    %v1429 = vpop.xlane.xlu0 %1428
    %v1430 = vrcp.pop 50.0
    %v1431 = vmul.f32 %v1426, %v1430
    %v1432 = vmul.f32 %v1429, %v1430
    %v1433 = vsub.f32 %v1413, %v1431
    %v1434 = vsub.f32 %v1418, %v1432
    %v1435 = vmul.f32 %v1433, %v1433
    %v1436 = vmul.f32 %v1434, %v1434
    %v1437 = vsel %vm1423, %v1435, 0.0
    %1438 = vadd.xlane.f32.xlu0 %v1437
    %v1439 = vpop.xlane.xlu0 %1438
    %v1440 = vsel %vm1423, %v1436, 0.0
    %1441 = vadd.xlane.f32.xlu0 %v1440
    %v1442 = vpop.xlane.xlu0 %1441
    %v1443 = vmul.f32 %v1439, %v1430
    %v1444 = vmul.f32 %v1442, %v1430
    %v1445 = vadd.f32 %v1443, 1e-05
    %v1446 = vadd.f32 %v1444, 1e-05
    %v1447 = vrsqrt.pop %v1445
    %v1448 = vrsqrt.pop %v1446
    %v1449 = vmul.f32 %v1433, %v1447
    %v1450 = vmul.f32 %v1434, %v1448
    %v1452 = vlaneseq
    %v1453 = vshrl.u32 %v1452, 7
    %v1454 = vsub.s32 0, %v1453
    %v1455 = vrot.slane %v1421, %v1454
    %v1457 = vmul.f32 %v1449, %v1455
    %v1458 = vmul.f32 %v1450, %v1455
    %v1460 = vlaneseq
    %v1461 = vshrl.u32 %v1460, 7
    %v1462 = vsub.s32 0, %v1461
    %v1463 = vrot.slane %v1422, %v1462
    %v1465 = vadd.f32 %v1457, %v1463
    %v1466 = vadd.f32 %v1458, %v1463
    %v1467 = vmax.f32 %v1465, 0.0
    %v1468 = vmax.f32 %v1466, 0.0
    %v1469 = vld [vmem:[%s7] sm:$0xff]
    %v1470 = vld [vmem:[%s7 + $0x8] sm:$0xff]
    %v1471 = vld [vmem:[%s7 + $0x10] sm:$0xff]
    %v1472 = vld [vmem:[%s7 + $0x18] sm:$0xff]
    %v1473 = vld [vmem:[%s7 + $0x20] sm:$0xff]
    %v1474 = vld [vmem:[%s7 + $0x28] sm:$0xff]
    %v1475 = vld [vmem:[%s7 + $0x30] sm:$0x3]
    %v1476 = vld [vmem:[%s5 + $0x8] sm:$0x1]
    %v1478 = vlaneseq
    %v1479 = vshrl.u32 %v1478, 7
    %v1480 = vsub.s32 0, %v1479
    %v1481 = vrot.slane %v1476, %v1480
    %v1484 = vsel %vm1423, %v1467, 0
    %v1487 = vsel %vm1423, %v1468, 0
    %vm1489 = vcmask 1041408
    %v1491 = vsel %vm1489, %v1475, 0
    %1493 = vmatprep.subr.mxu0 0.0
    %1494 = vmatpush1.msra.mxu0 0.0
    %1495 = vmatprep.subr.mxu0 0.0
    %1496 = vmatpush1.msra.mxu0 0.0
    %1497 = vmatprep.subr.mxu0 0.0
    %1498 = vmatpush1.msra.mxu0 0.0
    %1499 = vmatprep.subr.mxu0 0.0
    %1500 = vmatpush1.msra.mxu0 0.0
    %1501 = vmatprep.subr.mxu0 0.0
    %1502 = vmatpush1.msra.mxu0 0.0
    %1503 = vmatprep.subr.mxu0 0.0
    %1504 = vmatpush1.msra.mxu0 0.0
    %1505 = vmatprep.subr.mxu0 0.0
    %1506 = vmatpush1.msra.mxu0 0.0
    %1507 = vmatprep.subr.mxu0 0.0
    %1508 = vmatpush1.msra.mxu0 0.0
    %1509 = vmatprep.subr.mxu0 0.0
    %1510 = vmatpush1.msra.mxu0 0.0
    %1511 = vmatprep.subr.mxu0 0.0
    %1512 = vmatpush1.msra.mxu0 %v1491
    %1513 = vmatprep.subr.mxu0 0.0
    %1514 = vmatpush1.msra.mxu0 %v1474
    %1515 = vmatprep.subr.mxu0 0.0
    %1516 = vmatpush1.msra.mxu0 %v1473
    %1517 = vmatprep.subr.mxu0 0.0
    %1518 = vmatpush1.msra.mxu0 %v1472
    %1519 = vmatprep.subr.mxu0 0.0
    %1520 = vmatpush1.msra.mxu0 %v1471
    %1521 = vmatprep.subr.mxu0 0.0
    %1522 = vmatpush1.msra.mxu0 %v1470
    %1523 = vmatprep.subr.mxu0 0.0
    %1524 = vmatpush1.msra.mxu0 %v1469
    %1525 = vmatprep.subr.mxu0 0.0
    %1526 = vmatpush2.msra.mxu0 0.0
    %1527 = vmatprep.subr.mxu0 0.0
    %1528 = vmatpush2.msra.mxu0 0.0
    %1529 = vmatprep.subr.mxu0 0.0
    %1530 = vmatpush2.msra.mxu0 0.0
    %1531 = vmatprep.subr.mxu0 0.0
    %1532 = vmatpush2.msra.mxu0 0.0
    %1533 = vmatprep.subr.mxu0 0.0
    %1534 = vmatpush2.msra.mxu0 0.0
    %1535 = vmatprep.subr.mxu0 0.0
    %1536 = vmatpush2.msra.mxu0 0.0
    %1537 = vmatprep.subr.mxu0 0.0
    %1538 = vmatpush2.msra.mxu0 0.0
    %1539 = vmatprep.subr.mxu0 0.0
    %1540 = vmatpush2.msra.mxu0 0.0
    %1541 = vmatprep.subr.mxu0 0.0
    %1542 = vmatpush2.msra.mxu0 0.0
    %1543 = vmatprep.subr.mxu0 0.0
    %1544 = vmatpush2.msra.mxu0 0.0
    %1545 = vmatprep.subr.mxu0 0.0
    %1546 = vmatpush2.msra.mxu0 0.0
    %1547 = vmatprep.subr.mxu0 0.0
    %1548 = vmatpush2.msra.mxu0 0.0
    %1549 = vmatprep.subr.mxu0 0.0
    %1550 = vmatpush2.msra.mxu0 0.0
    %1551 = vmatprep.subr.mxu0 0.0
    %1552 = vmatpush2.msra.mxu0 0.0
    %1553 = vmatprep.subr.mxu0 0.0
    %1554 = vmatpush2.msra.mxu0 0.0
    %1555 = vmatprep.subr.mxu0 0.0
    %1556 = vmatpush2.msra.mxu0 0.0
    %1557 = vmatprep.mubr.f32.mxu0 0.0
    %1558 = vmatmul.mubr.f32.gmra.mxu0 %v1484
    %v1559 = vpop.f32.mrf.mxu0
    %v1560 = vadd.f32 %v1481, %v1559
    %v1561 = vpop.f32.mrf.mxu0
    %1562 = vmatprep.mubr.f32.mxu0 0.0
    %1563 = vmatmul.mubr.f32.gmra.mxu0 %v1487
    %v1564 = vpop.f32.mrf.mxu0
    %v1565 = vadd.f32 %v1481, %v1564
    %v1566 = vpop.f32.mrf.mxu0
    %1567 = vdwg.mxu0
    %v1568 = vld [vmem:[%s5 + $0x9] sm:$0x1]
    %v1569 = vld [vmem:[%s5 + $0xa] sm:$0x1]
    %vm1570 = vcmask 162816
    %v1571 = vsel %vm1570, %v1560, 0.0
    %1572 = vadd.xlane.f32.xlu0 %v1571
    %v1573 = vpop.xlane.xlu0 %1572
    %v1574 = vsel %vm1570, %v1565, 0.0
    %1575 = vadd.xlane.f32.xlu0 %v1574
    %v1576 = vpop.xlane.xlu0 %1575
    %v1577 = vrcp.pop 20.0
    %v1578 = vmul.f32 %v1573, %v1577
    %v1579 = vmul.f32 %v1576, %v1577
    %v1580 = vsub.f32 %v1560, %v1578
    %v1581 = vsub.f32 %v1565, %v1579
    %v1582 = vmul.f32 %v1580, %v1580
    %v1583 = vmul.f32 %v1581, %v1581
    %v1584 = vsel %vm1570, %v1582, 0.0
    %1585 = vadd.xlane.f32.xlu0 %v1584
    %v1586 = vpop.xlane.xlu0 %1585
    %v1587 = vsel %vm1570, %v1583, 0.0
    %1588 = vadd.xlane.f32.xlu0 %v1587
    %v1589 = vpop.xlane.xlu0 %1588
    %v1590 = vmul.f32 %v1586, %v1577
    %v1591 = vmul.f32 %v1589, %v1577
    %v1592 = vadd.f32 %v1590, 1e-05
    %v1593 = vadd.f32 %v1591, 1e-05
    %v1594 = vrsqrt.pop %v1592
    %v1595 = vrsqrt.pop %v1593
    %v1596 = vmul.f32 %v1580, %v1594
    %v1597 = vmul.f32 %v1581, %v1595
    %v1599 = vlaneseq
    %v1600 = vshrl.u32 %v1599, 7
    %v1601 = vsub.s32 0, %v1600
    %v1602 = vrot.slane %v1568, %v1601
    %v1604 = vmul.f32 %v1596, %v1602
    %v1605 = vmul.f32 %v1597, %v1602
    %v1607 = vlaneseq
    %v1608 = vshrl.u32 %v1607, 7
    %v1609 = vsub.s32 0, %v1608
    %v1610 = vrot.slane %v1569, %v1609
    %v1612 = vadd.f32 %v1604, %v1610
    %v1613 = vadd.f32 %v1605, %v1610
    %v1614 = vmax.f32 %v1612, 0.0
    %v1615 = vmax.f32 %v1613, 0.0
    %v1616 = vld [vmem:[%s8] sm:$0xff]
    %v1617 = vld [vmem:[%s8 + $0x8] sm:$0xff]
    %v1618 = vld [vmem:[%s8 + $0x10] sm:$0xf]
    %v1619 = vld [vmem:[%s5 + $0xb] sm:$0x1]
    %v1621 = vlaneseq
    %v1622 = vshrl.u32 %v1621, 7
    %v1623 = vsub.s32 0, %v1622
    %v1624 = vrot.slane %v1619, %v1623
    %v1627 = vsel %vm1570, %v1614, 0
    %v1630 = vsel %vm1570, %v1615, 0
    %vm1632 = vcmask 1043456
    %v1634 = vsel %vm1632, %v1618, 0
    %1636 = vmatprep.subr.mxu0 0.0
    %1637 = vmatpush1.msra.mxu0 0.0
    %1638 = vmatprep.subr.mxu0 0.0
    %1639 = vmatpush1.msra.mxu0 0.0
    %1640 = vmatprep.subr.mxu0 0.0
    %1641 = vmatpush1.msra.mxu0 0.0
    %1642 = vmatprep.subr.mxu0 0.0
    %1643 = vmatpush1.msra.mxu0 0.0
    %1644 = vmatprep.subr.mxu0 0.0
    %1645 = vmatpush1.msra.mxu0 0.0
    %1646 = vmatprep.subr.mxu0 0.0
    %1647 = vmatpush1.msra.mxu0 0.0
    %1648 = vmatprep.subr.mxu0 0.0
    %1649 = vmatpush1.msra.mxu0 0.0
    %1650 = vmatprep.subr.mxu0 0.0
    %1651 = vmatpush1.msra.mxu0 0.0
    %1652 = vmatprep.subr.mxu0 0.0
    %1653 = vmatpush1.msra.mxu0 0.0
    %1654 = vmatprep.subr.mxu0 0.0
    %1655 = vmatpush1.msra.mxu0 0.0
    %1656 = vmatprep.subr.mxu0 0.0
    %1657 = vmatpush1.msra.mxu0 0.0
    %1658 = vmatprep.subr.mxu0 0.0
    %1659 = vmatpush1.msra.mxu0 0.0
    %1660 = vmatprep.subr.mxu0 0.0
    %1661 = vmatpush1.msra.mxu0 0.0
    %1662 = vmatprep.subr.mxu0 0.0
    %1663 = vmatpush1.msra.mxu0 %v1634
    %1664 = vmatprep.subr.mxu0 0.0
    %1665 = vmatpush1.msra.mxu0 %v1617
    %1666 = vmatprep.subr.mxu0 0.0
    %1667 = vmatpush1.msra.mxu0 %v1616
    %1668 = vmatprep.subr.mxu0 0.0
    %1669 = vmatpush2.msra.mxu0 0.0
    %1670 = vmatprep.subr.mxu0 0.0
    %1671 = vmatpush2.msra.mxu0 0.0
    %1672 = vmatprep.subr.mxu0 0.0
    %1673 = vmatpush2.msra.mxu0 0.0
    %1674 = vmatprep.subr.mxu0 0.0
    %1675 = vmatpush2.msra.mxu0 0.0
    %1676 = vmatprep.subr.mxu0 0.0
    %1677 = vmatpush2.msra.mxu0 0.0
    %1678 = vmatprep.subr.mxu0 0.0
    %1679 = vmatpush2.msra.mxu0 0.0
    %1680 = vmatprep.subr.mxu0 0.0
    %1681 = vmatpush2.msra.mxu0 0.0
    %1682 = vmatprep.subr.mxu0 0.0
    %1683 = vmatpush2.msra.mxu0 0.0
    %1684 = vmatprep.subr.mxu0 0.0
    %1685 = vmatpush2.msra.mxu0 0.0
    %1686 = vmatprep.subr.mxu0 0.0
    %1687 = vmatpush2.msra.mxu0 0.0
    %1688 = vmatprep.subr.mxu0 0.0
    %1689 = vmatpush2.msra.mxu0 0.0
    %1690 = vmatprep.subr.mxu0 0.0
    %1691 = vmatpush2.msra.mxu0 0.0
    %1692 = vmatprep.subr.mxu0 0.0
    %1693 = vmatpush2.msra.mxu0 0.0
    %1694 = vmatprep.subr.mxu0 0.0
    %1695 = vmatpush2.msra.mxu0 0.0
    %1696 = vmatprep.subr.mxu0 0.0
    %1697 = vmatpush2.msra.mxu0 0.0
    %1698 = vmatprep.subr.mxu0 0.0
    %1699 = vmatpush2.msra.mxu0 0.0
    %1700 = vmatprep.mubr.f32.mxu0 0.0
    %1701 = vmatmul.mubr.f32.gmra.mxu0 %v1627
    %v1702 = vpop.f32.mrf.mxu0
    %v1703 = vadd.f32 %v1624, %v1702
    %v1704 = vpop.f32.mrf.mxu0
    %1705 = vmatprep.mubr.f32.mxu0 0.0
    %1706 = vmatmul.mubr.f32.gmra.mxu0 %v1630
    %v1707 = vpop.f32.mrf.mxu0
    %v1708 = vadd.f32 %v1624, %v1707
    %v1709 = vpop.f32.mrf.mxu0
    %1710 = vdwg.mxu0
    %v1711 = vld [vmem:[%s5 + $0xc] sm:$0x1]
    %v1712 = vld [vmem:[%s5 + $0xd] sm:$0x1]
    %vm1713 = vcmask 80896
    %v1714 = vsel %vm1713, %v1703, 0.0
    %1715 = vadd.xlane.f32.xlu0 %v1714
    %v1716 = vpop.xlane.xlu0 %1715
    %v1717 = vsel %vm1713, %v1708, 0.0
    %1718 = vadd.xlane.f32.xlu0 %v1717
    %v1719 = vpop.xlane.xlu0 %1718
    %v1720 = vrcp.pop 10.0
    %v1721 = vmul.f32 %v1716, %v1720
    %v1722 = vmul.f32 %v1719, %v1720
    %v1723 = vsub.f32 %v1703, %v1721
    %v1724 = vsub.f32 %v1708, %v1722
    %v1725 = vmul.f32 %v1723, %v1723
    %v1726 = vmul.f32 %v1724, %v1724
    %v1727 = vsel %vm1713, %v1725, 0.0
    %1728 = vadd.xlane.f32.xlu0 %v1727
    %v1729 = vpop.xlane.xlu0 %1728
    %v1730 = vsel %vm1713, %v1726, 0.0
    %1731 = vadd.xlane.f32.xlu0 %v1730
    %v1732 = vpop.xlane.xlu0 %1731
    %v1733 = vmul.f32 %v1729, %v1720
    %v1734 = vmul.f32 %v1732, %v1720
    %v1735 = vadd.f32 %v1733, 1e-05
    %v1736 = vadd.f32 %v1734, 1e-05
    %v1737 = vrsqrt.pop %v1735
    %v1738 = vrsqrt.pop %v1736
    %v1739 = vmul.f32 %v1723, %v1737
    %v1740 = vmul.f32 %v1724, %v1738
    %v1742 = vlaneseq
    %v1743 = vshrl.u32 %v1742, 7
    %v1744 = vsub.s32 0, %v1743
    %v1745 = vrot.slane %v1711, %v1744
    %v1747 = vmul.f32 %v1739, %v1745
    %v1748 = vmul.f32 %v1740, %v1745
    %v1750 = vlaneseq
    %v1751 = vshrl.u32 %v1750, 7
    %v1752 = vsub.s32 0, %v1751
    %v1753 = vrot.slane %v1712, %v1752
    %v1755 = vadd.f32 %v1747, %v1753
    %v1756 = vadd.f32 %v1748, %v1753
    %v1757 = vmax.f32 %v1755, 0.0
    %v1758 = vmax.f32 %v1756, 0.0
    %v1759 = vld [vmem:[%s9] sm:$0xff]
    %v1760 = vld [vmem:[%s9 + $0x8] sm:$0x3]
    %v1761 = vld [vmem:[%s5 + $0xe] sm:$0x1]
    %v1763 = vlaneseq
    %v1764 = vshrl.u32 %v1763, 7
    %v1765 = vsub.s32 0, %v1764
    %v1766 = vrot.slane %v1761, %v1765
    %v1769 = vsel %vm1713, %v1757, 0
    %v1772 = vsel %vm1713, %v1758, 0
    %v1775 = vsel %vm1489, %v1760, 0
    %1777 = vmatprep.subr.mxu0 0.0
    %1778 = vmatpush1.msra.mxu0 0.0
    %1779 = vmatprep.subr.mxu0 0.0
    %1780 = vmatpush1.msra.mxu0 0.0
    %1781 = vmatprep.subr.mxu0 0.0
    %1782 = vmatpush1.msra.mxu0 0.0
    %1783 = vmatprep.subr.mxu0 0.0
    %1784 = vmatpush1.msra.mxu0 0.0
    %1785 = vmatprep.subr.mxu0 0.0
    %1786 = vmatpush1.msra.mxu0 0.0
    %1787 = vmatprep.subr.mxu0 0.0
    %1788 = vmatpush1.msra.mxu0 0.0
    %1789 = vmatprep.subr.mxu0 0.0
    %1790 = vmatpush1.msra.mxu0 0.0
    %1791 = vmatprep.subr.mxu0 0.0
    %1792 = vmatpush1.msra.mxu0 0.0
    %1793 = vmatprep.subr.mxu0 0.0
    %1794 = vmatpush1.msra.mxu0 0.0
    %1795 = vmatprep.subr.mxu0 0.0
    %1796 = vmatpush1.msra.mxu0 0.0
    %1797 = vmatprep.subr.mxu0 0.0
    %1798 = vmatpush1.msra.mxu0 0.0
    %1799 = vmatprep.subr.mxu0 0.0
    %1800 = vmatpush1.msra.mxu0 0.0
    %1801 = vmatprep.subr.mxu0 0.0
    %1802 = vmatpush1.msra.mxu0 0.0
    %1803 = vmatprep.subr.mxu0 0.0
    %1804 = vmatpush1.msra.mxu0 0.0
    %1805 = vmatprep.subr.mxu0 0.0
    %1806 = vmatpush1.msra.mxu0 %v1775
    %1807 = vmatprep.subr.mxu0 0.0
    %1808 = vmatpush1.msra.mxu0 %v1759
    %1809 = vmatprep.subr.mxu0 0.0
    %1810 = vmatpush2.msra.mxu0 0.0
    %1811 = vmatprep.subr.mxu0 0.0
    %1812 = vmatpush2.msra.mxu0 0.0
    %1813 = vmatprep.subr.mxu0 0.0
    %1814 = vmatpush2.msra.mxu0 0.0
    %1815 = vmatprep.subr.mxu0 0.0
    %1816 = vmatpush2.msra.mxu0 0.0
    %1817 = vmatprep.subr.mxu0 0.0
    %1818 = vmatpush2.msra.mxu0 0.0
    %1819 = vmatprep.subr.mxu0 0.0
    %1820 = vmatpush2.msra.mxu0 0.0
    %1821 = vmatprep.subr.mxu0 0.0
    %1822 = vmatpush2.msra.mxu0 0.0
    %1823 = vmatprep.subr.mxu0 0.0
    %1824 = vmatpush2.msra.mxu0 0.0
    %1825 = vmatprep.subr.mxu0 0.0
    %1826 = vmatpush2.msra.mxu0 0.0
    %1827 = vmatprep.subr.mxu0 0.0
    %1828 = vmatpush2.msra.mxu0 0.0
    %1829 = vmatprep.subr.mxu0 0.0
    %1830 = vmatpush2.msra.mxu0 0.0
    %1831 = vmatprep.subr.mxu0 0.0
    %1832 = vmatpush2.msra.mxu0 0.0
    %1833 = vmatprep.subr.mxu0 0.0
    %1834 = vmatpush2.msra.mxu0 0.0
    %1835 = vmatprep.subr.mxu0 0.0
    %1836 = vmatpush2.msra.mxu0 0.0
    %1837 = vmatprep.subr.mxu0 0.0
    %1838 = vmatpush2.msra.mxu0 0.0
    %1839 = vmatprep.subr.mxu0 0.0
    %1840 = vmatpush2.msra.mxu0 0.0
    %1841 = vmatprep.mubr.f32.mxu0 0.0
    %1842 = vmatmul.mubr.f32.gmra.mxu0 %v1769
    %v1843 = vpop.f32.mrf.mxu0
    %v1844 = vadd.f32 %v1766, %v1843
    %v1845 = vpop.f32.mrf.mxu0
    %1846 = vmatprep.mubr.f32.mxu0 0.0
    %1847 = vmatmul.mubr.f32.gmra.mxu0 %v1772
    %v1848 = vpop.f32.mrf.mxu0
    %v1849 = vadd.f32 %v1766, %v1848
    %v1850 = vpop.f32.mrf.mxu0
    %1851 = vdwg.mxu0
    %1852 = vst [vmem:[#allocation3] sm:$0xff] %v1844
    %1853 = vst [vmem:[#allocation3 + $0x8] sm:$0xff] %v1849
    // Predicated region
    $region42: #{tpu_custom_call.1} parent=1 // pred_check
      _
    $region43: #{tpu_custom_call.1} parent=1 // pred_check_branch
      %1855 = sbr.rel (0) target = $region45
    $region44: #{tpu_custom_call.1} parent=1 // pred_region
      %s1857 = ssub.s32 256, 256
      %1858 = vsyncadd [#allocation4], %s1857
      %s1859 = sshll.u32 [#allocation3], 4
      %s1860 = int_to_ptr.vmem [resolvable:$true] %s1859
      %1865 = dma.vmem_to_hbm [thread:$0]  %s1860, 256, %s10, [#allocation4], 128, 128, 8
    $region45: #{tpu_custom_call.1} parent=1 // pred_fallthru
      _
    // Predicated region
    $region46: #{tpu_custom_call.1} parent=1 // pred_check
      _
    $region47: #{tpu_custom_call.1} parent=1 // pred_check_branch
      %1867 = sbr.rel (0) target = $region49
    $region48: #{tpu_custom_call.1} parent=1 // pred_region
      %1868 = dma.done [#allocation4], 256
    $region49: #{tpu_custom_call.1} parent=1 // pred_fallthru
      _
    %1869 = vsyncpa [#allocation4], 1

</llo_original>
